<compile_context>
chip_gen: v5e
topology: v5e:2x2
jax: 0.10.0
libtpu: 0.0.40
codegen_flags: <defaults>
</compile_context>

<pallas_src>
import functools

import numpy as np
import jax
import jax.numpy as jnp
from jax.experimental import pallas as pl
from jax.experimental.pallas import tpu as pltpu


_MXU_K_TARGET = 256        # native MXU contraction on v6e/v7x; use 128 on v5e
_VMEM_LIMIT = 64 * 1024 * 1024


# ----------------------------------------------------------------------------
# Host-side bilinear interpolation tables (match torch.nn.functional.interpolate)
# ----------------------------------------------------------------------------
@functools.lru_cache(maxsize=None)
def _bilinear_taps(out_size, in_size, align_corners):
    o = np.arange(out_size, dtype=np.float64)
    if align_corners:
        if out_size > 1:
            src = o * (in_size - 1) / (out_size - 1)
        else:
            src = np.zeros_like(o)
    else:
        src = (o + 0.5) * (in_size / out_size) - 0.5
        src = np.maximum(src, 0.0)
    i0 = np.minimum(np.floor(src).astype(np.int64), in_size - 1)
    i1 = np.minimum(i0 + 1, in_size - 1)
    frac = src - i0
    return (tuple(int(v) for v in i0),
            tuple(int(v) for v in i1),
            tuple(float(v) for v in (1.0 - frac)),
            tuple(float(v) for v in frac))


@functools.lru_cache(maxsize=None)
def _bilinear_matrix_t(out_size, in_size, align_corners):
    """Transposed dense interp matrix (in_size, out_size) for the W pass."""
    i0, i1, w0, w1 = _bilinear_taps(out_size, in_size, align_corners)
    a = np.zeros((in_size, out_size), dtype=np.float32)
    for o in range(out_size):
        a[i0[o], o] += w0[o]
        a[i1[o], o] += w1[o]
    return a


@functools.lru_cache(maxsize=None)
def _w_interp_blockdiag(out_size, in_size, align_corners, g):
    """Block-diagonal W-interp matrix handling g image rows per matmul:
       shape (g*in_size, g*out_size)."""
    a = _bilinear_matrix_t(out_size, in_size, align_corners)
    m = np.zeros((g * in_size, g * out_size), dtype=np.float32)
    for r in range(g):
        m[r * in_size:(r + 1) * in_size, r * out_size:(r + 1) * out_size] = a
    return m


def _pick_group(hi, wi, target_k=_MXU_K_TARGET):
    """Rows per W-resize matmul: fill the MXU contraction and keep 128-aligned
    slice offsets; small levels collapse to a single matmul."""
    if hi * wi <= 2 * target_k:
        return hi
    g = max(1, min(hi, target_k // max(wi, 1)))
    while g > 1 and hi % g:
        g -= 1
    return g


def _pick_e_tile(e, target=256):
    """Channel-block size for mlp_and_resize (bounds VMEM at production E)."""
    if e <= target:
        return e
    for cand in range(target, 7, -8):
        if e % cand == 0:
            return cand
    return e


def _pick_tile(p, target=1024):
    """Lane-dense pixel tile that divides P."""
    if p <= target:
        return p
    for t in range(target, 0, -128):
        if p % t == 0:
            return t
    return p


# ----------------------------------------------------------------------------
# Kernel 1: MLP projection + separable bilinear resize (c2/c3/c4 levels),
# tiled over (batch, E-blocks).
#   x_ref   : (1, Ci, Hi*Wi)   bf16   (resident across E blocks)
#   wt_ref  : (TE, Ci)         bf16   (torch Linear weight layout, E-tiled)
#   b_ref   : (TE, 1)          f32
#   awg_ref : (G*Wi, G*Wo)     bf16   block-diag W-axis interp matrix
#   o_ref   : (1, TE, Ho*Wo)   bf16   flat pixel-major layout (full-tile stores)
#   t_scr   : (TE, Hi*Wo)      bf16   width-resized rows
# ----------------------------------------------------------------------------
def _mlp_resize_kernel(x_ref, wt_ref, b_ref, awg_ref, o_ref, t_scr,
                       *, hi, wi, ho, wo, g, i0, i1, w0, w1):
    gw_i, gw_o = g * wi, g * wo

    # 1+2) channel projection and W resize, G image rows per MXU matmul.
    #      Both dots have lane-aligned, full-K operands.
    for blk in range(hi // g):
        xg = x_ref[0, :, blk * gw_i:(blk + 1) * gw_i]            # (Ci, G*Wi)
        yg = jnp.dot(wt_ref[...], xg, preferred_element_type=jnp.float32)
        yg = (yg + b_ref[...]).astype(jnp.bfloat16)              # (TE, G*Wi)
        t_scr[:, blk * gw_o:(blk + 1) * gw_o] = jnp.dot(
            yg, awg_ref[...], preferred_element_type=jnp.float32
        ).astype(jnp.bfloat16)                                   # (TE, G*Wo)

    # 3) H resize: static 2-tap lerp.  Flat layout means each row slab is a
    #    full (sublane x Wo)-lane slice -> unmasked loads/stores; each row's
    #    temporaries are dead right after its store (bounded live ranges).
    for r in range(ho):
        lo = t_scr[:, i0[r] * wo:(i0[r] + 1) * wo].astype(jnp.float32)
        if (w1[r] > 0.0) and (i1[r] != i0[r]):
            up = t_scr[:, i1[r] * wo:(i1[r] + 1) * wo].astype(jnp.float32)
            val = w0[r] * lo + w1[r] * up
        else:
            val = lo
        o_ref[0, :, r * wo:(r + 1) * wo] = val.astype(o_ref.dtype)


def mlp_and_resize(x, wt, b, hi, wi, ho, wo, align_corners):
    n, ci, pi = x.shape
    e = wt.shape[0]
    te = _pick_e_tile(e)
    g = _pick_group(hi, wi)
    awg = jnp.asarray(_w_interp_blockdiag(wo, wi, align_corners, g),
                      jnp.bfloat16)
    i0, i1, w0, w1 = _bilinear_taps(ho, hi, align_corners)
    kernel = functools.partial(_mlp_resize_kernel, hi=hi, wi=wi, ho=ho, wo=wo,
                               g=g, i0=i0, i1=i1, w0=w0, w1=w1)
    p = ho * wo
    return pl.pallas_call(
        kernel,
        out_shape=jax.ShapeDtypeStruct((n, e, p), jnp.bfloat16),
        grid=(n, e // te),
        in_specs=[
            pl.BlockSpec((1, ci, pi), lambda bi, ei: (bi, 0, 0)),
            pl.BlockSpec((te, ci), lambda bi, ei: (ei, 0)),
            pl.BlockSpec((te, 1), lambda bi, ei: (ei, 0)),
            pl.BlockSpec((g * wi, g * wo), lambda bi, ei: (0, 0)),
        ],
        out_specs=pl.BlockSpec((1, te, p), lambda bi, ei: (bi, ei, 0)),
        scratch_shapes=[pltpu.VMEM((te, hi * wo), jnp.bfloat16)],
        compiler_params=pltpu.CompilerParams(
            dimension_semantics=("parallel", "parallel"),
            vmem_limit_bytes=_VMEM_LIMIT),
    )(x, wt, b, awg)


# ----------------------------------------------------------------------------
# Kernel 2: linear_fuse (1x1 conv, BN folded) + linear_pred (1x1 conv),
# tiled over (batch, pixel tiles).  The channel concat is replaced by a sum of
# four dots; the c1 MLP projection and all biases are folded on the host, so
# the c1 input is the raw backbone feature.
#   cX_ref  : (1, E, TP)   bf16        wfX_ref  : (E, E)   bf16  (BN-scaled)
#   c1_ref  : (1, Ci1, TP) bf16        wf1c_ref : (E, Ci1) bf16  (wf1 @ W_c1)
#   wpt_ref : (NCpad, E)   bf16        bp_ref   : (NCpad, 1) f32 (all biases)
#   o_ref   : (1, NCpad, TP)
# ----------------------------------------------------------------------------
def _fuse_pred_kernel(c4_ref, c3_ref, c2_ref, c1_ref,
                      wf4_ref, wf3_ref, wf2_ref, wf1c_ref,
                      wpt_ref, bp_ref, o_ref):
    z = jnp.dot(wf4_ref[...], c4_ref[0], preferred_element_type=jnp.float32)
    z = z + jnp.dot(wf3_ref[...], c3_ref[0], preferred_element_type=jnp.float32)
    z = z + jnp.dot(wf2_ref[...], c2_ref[0], preferred_element_type=jnp.float32)
    z = z + jnp.dot(wf1c_ref[...], c1_ref[0], preferred_element_type=jnp.float32)
    # BN scale is folded into wf*, and (fuse bias + BN shift + c1-MLP bias)
    # are folded through the pred weights into bp (no activation in between).
    out = jnp.dot(wpt_ref[...], z.astype(jnp.bfloat16),
                  preferred_element_type=jnp.float32)
    o_ref[0] = (out + bp_ref[...]).astype(o_ref.dtype)


def fuse_and_predict(c4, c3, c2, c1raw, wf4, wf3, wf2, wf1c, wpt, bp,
                     tp_target=1024, out_dtype=jnp.float32):
    n, e, p = c2.shape
    ci1 = c1raw.shape[1]
    nc_pad = wpt.shape[0]
    tp = _pick_tile(p, tp_target)
    lvl_spec = pl.BlockSpec((1, e, tp), lambda bi, ti: (bi, 0, ti))
    w_spec = pl.BlockSpec((e, e), lambda bi, ti: (0, 0))
    return pl.pallas_call(
        _fuse_pred_kernel,
        out_shape=jax.ShapeDtypeStruct((n, nc_pad, p), out_dtype),
        grid=(n, pl.cdiv(p, tp)),
        in_specs=[lvl_spec, lvl_spec, lvl_spec,
                  pl.BlockSpec((1, ci1, tp), lambda bi, ti: (bi, 0, ti)),
                  w_spec, w_spec, w_spec,
                  pl.BlockSpec((e, ci1), lambda bi, ti: (0, 0)),
                  pl.BlockSpec((nc_pad, e), lambda bi, ti: (0, 0)),
                  pl.BlockSpec((nc_pad, 1), lambda bi, ti: (0, 0))],
        out_specs=pl.BlockSpec((1, nc_pad, tp), lambda bi, ti: (bi, 0, ti)),
        compiler_params=pltpu.CompilerParams(
            dimension_semantics=("parallel", "parallel"),
            vmem_limit_bytes=_VMEM_LIMIT),
    )(c4, c3, c2, c1raw, wf4, wf3, wf2, wf1c, wpt, bp)


# ----------------------------------------------------------------------------
# Parameters (torch-convention shapes) and forward wrapper
# ----------------------------------------------------------------------------
def init_params(key, in_channels, embed_dim, num_classes):
    ks = jax.random.split(key, 16)
    params = {}
    for idx, (name, c) in enumerate(zip(("c1", "c2", "c3", "c4"), in_channels)):
        params[f"w_{name}"] = 0.1 * jax.random.normal(
            ks[2 * idx], (embed_dim, c), jnp.float32)          # Linear: (E, Ci)
        params[f"b_{name}"] = 0.05 * jax.random.normal(
            ks[2 * idx + 1], (embed_dim,), jnp.float32)
    params["w_fuse"] = 0.05 * jax.random.normal(
        ks[8], (embed_dim, 4 * embed_dim), jnp.float32)        # Conv1x1: (E, 4E)
    params["b_fuse"] = 0.02 * jax.random.normal(
        ks[9], (embed_dim,), jnp.float32)
    params["bn_gamma"] = 1.0 + 0.1 * jax.random.normal(
        ks[10], (embed_dim,), jnp.float32)
    params["bn_beta"] = 0.1 * jax.random.normal(
        ks[11], (embed_dim,), jnp.float32)
    params["bn_mean"] = 0.05 * jax.random.normal(
        ks[12], (embed_dim,), jnp.float32)
    params["bn_var"] = 1.0 + 0.1 * jnp.abs(jax.random.normal(
        ks[13], (embed_dim,), jnp.float32))
    params["w_pred"] = 0.1 * jax.random.normal(
        ks[14], (num_classes, embed_dim), jnp.float32)         # Conv1x1: (NC, E)
    params["b_pred"] = 0.02 * jax.random.normal(
        ks[15], (num_classes,), jnp.float32)
    return params


def segformer_head_forward(inputs_nchw, params, in_index, align_corners,
                           embed_dim, num_classes, out_dtype=jnp.float32):
    # _transform_inputs with input_transform='multiple_select'
    feats = [inputs_nchw[i] for i in in_index]
    c1, c2, c3, c4 = feats
    n = c1.shape[0]
    h1, w1 = c1.shape[2], c1.shape[3]
    p = h1 * w1

    # c2/c3/c4: MLP projection + bilinear resize to (h1, w1), flat (N, E, P).
    level_feats = {}
    for name, c in (("c4", c4), ("c3", c3), ("c2", c2)):
        _, ci, hi, wi = c.shape
        x = c.reshape(n, ci, hi * wi).astype(jnp.bfloat16)     # channel-major
        wt = params[f"w_{name}"].astype(jnp.bfloat16)
        b = params[f"b_{name}"].reshape(embed_dim, 1)
        level_feats[name] = mlp_and_resize(x, wt, b, hi, wi, h1, w1,
                                           align_corners)

    # c1 level: the MLP projection is linear and feeds the (linear) fuse conv
    # directly (no resize), so it is folded into the fuse weights on the host.
    ci1 = c1.shape[1]
    x_c1 = c1.reshape(n, ci1, p).astype(jnp.bfloat16)

    # Fold eval-mode BatchNorm into the fuse weights (host, f32).
    eps = 1e-5
    scale = params["bn_gamma"] / jnp.sqrt(params["bn_var"] + eps)      # (E,)
    shift = params["bn_beta"] - params["bn_mean"] * scale
    wf = params["w_fuse"] * scale[:, None]                             # (E, 4E)
    # concat order in the reference is [_c4, _c3, _c2, _c1] along channels
    blocks = [wf[:, i * embed_dim:(i + 1) * embed_dim] for i in range(4)]
    wf4, wf3, wf2 = (bk.astype(jnp.bfloat16) for bk in blocks[:3])
    wf1 = blocks[3]                                                    # f32
    wf1c = (wf1 @ params["w_c1"]).astype(jnp.bfloat16)                 # (E, Ci1)

    # Fuse bias * BN scale + BN shift + c1-MLP bias contribution, then fold the
    # whole thing through the pred weights (no activation between fuse and pred
    # in this module; Dropout2d is identity in eval mode).
    bias_total = params["b_fuse"] * scale + shift + wf1 @ params["b_c1"]   # (E,)
    nc_pad = ((num_classes + 7) // 8) * 8
    wp = params["w_pred"]                                              # (NC, E)
    bp_fold = wp @ bias_total + params["b_pred"]                       # (NC,)
    wpt = jnp.zeros((nc_pad, embed_dim), jnp.float32)
    wpt = wpt.at[:num_classes].set(wp).astype(jnp.bfloat16)
    bp = jnp.zeros((nc_pad, 1), jnp.float32)
    bp = bp.at[:num_classes, 0].set(bp_fold)

    logits = fuse_and_predict(level_feats["c4"], level_feats["c3"],
                              level_feats["c2"], x_c1,
                              wf4, wf3, wf2, wf1c, wpt, bp,
                              out_dtype=out_dtype)                 # (N, NCp, P)
    logits = logits[:, :num_classes, :].reshape(n, num_classes, h1, w1)
    return logits                                                  # NCHW


if __name__ == "__main__":
    key = jax.random.PRNGKey(0)
    in_channels = (8, 16, 32, 64)
    in_index = [0, 1, 2, 3]
    embed_dim = 32
    num_classes = 8
    align_corners = False
    N = 2
    spatial = [(16, 16), (8, 8), (4, 4), (2, 2)]   # strides 4/8/16/32 of 64px img

    kx, kp = jax.random.split(key)
    xkeys = jax.random.split(kx, 4)
    inputs = [
        jax.random.normal(xkeys[i],
                          (N, in_channels[i], spatial[i][0], spatial[i][1]),
                          jnp.float32)
        for i in range(4)
    ]
    params = init_params(kp, in_channels, embed_dim, num_classes)

    out = segformer_head_forward(inputs, params, in_index, align_corners,
                                 embed_dim, num_classes)
    out = jax.block_until_ready(out)
    assert out.shape == (N, num_classes, spatial[0][0], spatial[0][1]), out.shape
    assert out.dtype == jnp.float32
    print("KERNEL_OK")
</pallas_src>

<mosaic_0001>
module attributes {stable_mosaic.version = 11 : i64} {
  func.func @_mlp_resize_kernel(%arg0: i32, %arg1: i32, %arg2: memref<1x64x4xbf16, #tpu.memory_space<vmem>>, %arg3: memref<32x64xbf16, #tpu.memory_space<vmem>>, %arg4: memref<32x1xf32, #tpu.memory_space<vmem>>, %arg5: memref<4x32xbf16, #tpu.memory_space<vmem>>, %arg6: memref<1x32x256xbf16, #tpu.memory_space<vmem>>, %arg7: memref<32x32xbf16, #tpu.memory_space<vmem>>) attributes {dimension_semantics = [#tpu.dimension_semantics<parallel>, #tpu.dimension_semantics<parallel>], iteration_bounds = array<i64: 2, 1>, scalar_prefetch = 0 : i64, scratch_operands = 1 : i64, tpu.core_type = #tpu.core_type<tc>, window_params = [{transform_indices = @transform_0, window_bounds = array<i64: 1, 64, 4>}, {transform_indices = @transform_1, window_bounds = array<i64: 32, 64>}, {transform_indices = @transform_2, window_bounds = array<i64: 32, 1>}, {pipeline_mode = #tpu.pipeline_mode<synchronous>, transform_indices = @transform_3, window_bounds = array<i64: 4, 32>}, {transform_indices = @transform_4, window_bounds = array<i64: 1, 32, 256>}]} {
    %c0 = arith.constant 0 : index
    %c0_0 = arith.constant 0 : index
    %c0_1 = arith.constant 0 : index
    %0 = vector.load %arg2[%c0, %c0_0, %c0_1] : memref<1x64x4xbf16, #tpu.memory_space<vmem>>, vector<1x64x4xbf16>
    %1 = vector.shape_cast %0 : vector<1x64x4xbf16> to vector<64x4xbf16>
    %c0_2 = arith.constant 0 : index
    %c0_3 = arith.constant 0 : index
    %2 = vector.load %arg3[%c0_2, %c0_3] : memref<32x64xbf16, #tpu.memory_space<vmem>>, vector<32x64xbf16>
    %cst = arith.constant dense<0.000000e+00> : vector<32x4xf32>
    %3 = tpu.matmul %2, %1, %cst {dimension_numbers = #tpu.dot_dimension_numbers<[1], [0], [0], [1], [0, 0, 1, 1], [], []>} : vector<32x64xbf16>, vector<64x4xbf16>, vector<32x4xf32> -> vector<32x4xf32>
    %c0_4 = arith.constant 0 : index
    %c0_5 = arith.constant 0 : index
    %4 = vector.load %arg4[%c0_4, %c0_5] : memref<32x1xf32, #tpu.memory_space<vmem>>, vector<32x1xf32>
    %5 = vector.broadcast %4 : vector<32x1xf32> to vector<32x4xf32>
    %6 = arith.addf %3, %5 : vector<32x4xf32>
    %7 = arith.truncf %6 : vector<32x4xf32> to vector<32x4xbf16>
    %c0_6 = arith.constant 0 : index
    %c0_7 = arith.constant 0 : index
    %8 = vector.load %arg5[%c0_6, %c0_7] : memref<4x32xbf16, #tpu.memory_space<vmem>>, vector<4x32xbf16>
    %cst_8 = arith.constant dense<0.000000e+00> : vector<32x32xf32>
    %9 = tpu.matmul %7, %8, %cst_8 {dimension_numbers = #tpu.dot_dimension_numbers<[1], [0], [0], [1], [0, 0, 1, 1], [], []>} : vector<32x4xbf16>, vector<4x32xbf16>, vector<32x32xf32> -> vector<32x32xf32>
    %10 = arith.truncf %9 : vector<32x32xf32> to vector<32x32xbf16>
    %c0_9 = arith.constant 0 : index
    %c0_10 = arith.constant 0 : index
    %11 = vector.load %arg7[%c0_9, %c0_10] : memref<32x32xbf16, #tpu.memory_space<vmem>>, vector<32x32xbf16>
    tpu.vector_store %arg7[%c0_9, %c0_10], %10 {strides = array<i32>} : memref<32x32xbf16, #tpu.memory_space<vmem>>, vector<32x32xbf16>,
    %c0_11 = arith.constant 0 : index
    %c0_12 = arith.constant 0 : index
    %12 = vector.load %arg7[%c0_11, %c0_12] : memref<32x32xbf16, #tpu.memory_space<vmem>>, vector<32x16xbf16>
    %13 = arith.extf %12 : vector<32x16xbf16> to vector<32x16xf32>
    %14 = arith.truncf %13 : vector<32x16xf32> to vector<32x16xbf16>
    %c0_13 = arith.constant 0 : index
    %c0_14 = arith.constant 0 : index
    %c0_15 = arith.constant 0 : index
    %15 = vector.load %arg6[%c0_13, %c0_14, %c0_15] : memref<1x32x256xbf16, #tpu.memory_space<vmem>>, vector<1x32x16xbf16>
    %16 = vector.shape_cast %15 : vector<1x32x16xbf16> to vector<32x16xbf16>
    %17 = vector.shape_cast %14 : vector<32x16xbf16> to vector<1x32x16xbf16>
    tpu.vector_store %arg6[%c0_13, %c0_14, %c0_15], %17 {strides = array<i32>} : memref<1x32x256xbf16, #tpu.memory_space<vmem>>, vector<1x32x16xbf16>,
    %c0_16 = arith.constant 0 : index
    %c0_17 = arith.constant 0 : index
    %18 = vector.load %arg7[%c0_16, %c0_17] : memref<32x32xbf16, #tpu.memory_space<vmem>>, vector<32x16xbf16>
    %19 = arith.extf %18 : vector<32x16xbf16> to vector<32x16xf32>
    %20 = arith.truncf %19 : vector<32x16xf32> to vector<32x16xbf16>
    %c0_18 = arith.constant 0 : index
    %c0_19 = arith.constant 0 : index
    %c16 = arith.constant 16 : index
    %21 = vector.load %arg6[%c0_18, %c0_19, %c16] : memref<1x32x256xbf16, #tpu.memory_space<vmem>>, vector<1x32x16xbf16>
    %22 = vector.shape_cast %21 : vector<1x32x16xbf16> to vector<32x16xbf16>
    %23 = vector.shape_cast %20 : vector<32x16xbf16> to vector<1x32x16xbf16>
    tpu.vector_store %arg6[%c0_18, %c0_19, %c16], %23 {strides = array<i32>} : memref<1x32x256xbf16, #tpu.memory_space<vmem>>, vector<1x32x16xbf16>,
    %c0_20 = arith.constant 0 : index
    %c0_21 = arith.constant 0 : index
    %24 = vector.load %arg7[%c0_20, %c0_21] : memref<32x32xbf16, #tpu.memory_space<vmem>>, vector<32x16xbf16>
    %25 = arith.extf %24 : vector<32x16xbf16> to vector<32x16xf32>
    %26 = arith.truncf %25 : vector<32x16xf32> to vector<32x16xbf16>
    %c0_22 = arith.constant 0 : index
    %c0_23 = arith.constant 0 : index
    %c32 = arith.constant 32 : index
    %27 = vector.load %arg6[%c0_22, %c0_23, %c32] : memref<1x32x256xbf16, #tpu.memory_space<vmem>>, vector<1x32x16xbf16>
    %28 = vector.shape_cast %27 : vector<1x32x16xbf16> to vector<32x16xbf16>
    %29 = vector.shape_cast %26 : vector<32x16xbf16> to vector<1x32x16xbf16>
    tpu.vector_store %arg6[%c0_22, %c0_23, %c32], %29 {strides = array<i32>} : memref<1x32x256xbf16, #tpu.memory_space<vmem>>, vector<1x32x16xbf16>,
    %c0_24 = arith.constant 0 : index
    %c0_25 = arith.constant 0 : index
    %30 = vector.load %arg7[%c0_24, %c0_25] : memref<32x32xbf16, #tpu.memory_space<vmem>>, vector<32x16xbf16>
    %31 = arith.extf %30 : vector<32x16xbf16> to vector<32x16xf32>
    %32 = arith.truncf %31 : vector<32x16xf32> to vector<32x16xbf16>
    %c0_26 = arith.constant 0 : index
    %c0_27 = arith.constant 0 : index
    %c48 = arith.constant 48 : index
    %33 = vector.load %arg6[%c0_26, %c0_27, %c48] : memref<1x32x256xbf16, #tpu.memory_space<vmem>>, vector<1x32x16xbf16>
    %34 = vector.shape_cast %33 : vector<1x32x16xbf16> to vector<32x16xbf16>
    %35 = vector.shape_cast %32 : vector<32x16xbf16> to vector<1x32x16xbf16>
    tpu.vector_store %arg6[%c0_26, %c0_27, %c48], %35 {strides = array<i32>} : memref<1x32x256xbf16, #tpu.memory_space<vmem>>, vector<1x32x16xbf16>,
    %c0_28 = arith.constant 0 : index
    %c0_29 = arith.constant 0 : index
    %36 = vector.load %arg7[%c0_28, %c0_29] : memref<32x32xbf16, #tpu.memory_space<vmem>>, vector<32x16xbf16>
    %37 = arith.extf %36 : vector<32x16xbf16> to vector<32x16xf32>
    %c0_30 = arith.constant 0 : index
    %c16_31 = arith.constant 16 : index
    %38 = vector.load %arg7[%c0_30, %c16_31] : memref<32x32xbf16, #tpu.memory_space<vmem>>, vector<32x16xbf16>
    %39 = arith.extf %38 : vector<32x16xbf16> to vector<32x16xf32>
    %cst_32 = arith.constant 9.375000e-01 : f32
    %40 = vector.broadcast %cst_32 : f32 to vector<32x16xf32>
    %41 = arith.mulf %40, %37 : vector<32x16xf32>
    %cst_33 = arith.constant 6.250000e-02 : f32
    %42 = vector.broadcast %cst_33 : f32 to vector<32x16xf32>
    %43 = arith.mulf %42, %39 : vector<32x16xf32>
    %44 = arith.addf %41, %43 : vector<32x16xf32>
    %45 = arith.truncf %44 : vector<32x16xf32> to vector<32x16xbf16>
    %c0_34 = arith.constant 0 : index
    %c0_35 = arith.constant 0 : index
    %c64 = arith.constant 64 : index
    %46 = vector.load %arg6[%c0_34, %c0_35, %c64] : memref<1x32x256xbf16, #tpu.memory_space<vmem>>, vector<1x32x16xbf16>
    %47 = vector.shape_cast %46 : vector<1x32x16xbf16> to vector<32x16xbf16>
    %48 = vector.shape_cast %45 : vector<32x16xbf16> to vector<1x32x16xbf16>
    tpu.vector_store %arg6[%c0_34, %c0_35, %c64], %48 {strides = array<i32>} : memref<1x32x256xbf16, #tpu.memory_space<vmem>>, vector<1x32x16xbf16>,
    %c0_36 = arith.constant 0 : index
    %c0_37 = arith.constant 0 : index
    %49 = vector.load %arg7[%c0_36, %c0_37] : memref<32x32xbf16, #tpu.memory_space<vmem>>, vector<32x16xbf16>
    %50 = arith.extf %49 : vector<32x16xbf16> to vector<32x16xf32>
    %c0_38 = arith.constant 0 : index
    %c16_39 = arith.constant 16 : index
    %51 = vector.load %arg7[%c0_38, %c16_39] : memref<32x32xbf16, #tpu.memory_space<vmem>>, vector<32x16xbf16>
    %52 = arith.extf %51 : vector<32x16xbf16> to vector<32x16xf32>
    %cst_40 = arith.constant 8.125000e-01 : f32
    %53 = vector.broadcast %cst_40 : f32 to vector<32x16xf32>
    %54 = arith.mulf %53, %50 : vector<32x16xf32>
    %cst_41 = arith.constant 1.875000e-01 : f32
    %55 = vector.broadcast %cst_41 : f32 to vector<32x16xf32>
    %56 = arith.mulf %55, %52 : vector<32x16xf32>
    %57 = arith.addf %54, %56 : vector<32x16xf32>
    %58 = arith.truncf %57 : vector<32x16xf32> to vector<32x16xbf16>
    %c0_42 = arith.constant 0 : index
    %c0_43 = arith.constant 0 : index
    %c80 = arith.constant 80 : index
    %59 = vector.load %arg6[%c0_42, %c0_43, %c80] : memref<1x32x256xbf16, #tpu.memory_space<vmem>>, vector<1x32x16xbf16>
    %60 = vector.shape_cast %59 : vector<1x32x16xbf16> to vector<32x16xbf16>
    %61 = vector.shape_cast %58 : vector<32x16xbf16> to vector<1x32x16xbf16>
    tpu.vector_store %arg6[%c0_42, %c0_43, %c80], %61 {strides = array<i32>} : memref<1x32x256xbf16, #tpu.memory_space<vmem>>, vector<1x32x16xbf16>,
    %c0_44 = arith.constant 0 : index
    %c0_45 = arith.constant 0 : index
    %62 = vector.load %arg7[%c0_44, %c0_45] : memref<32x32xbf16, #tpu.memory_space<vmem>>, vector<32x16xbf16>
    %63 = arith.extf %62 : vector<32x16xbf16> to vector<32x16xf32>
    %c0_46 = arith.constant 0 : index
    %c16_47 = arith.constant 16 : index
    %64 = vector.load %arg7[%c0_46, %c16_47] : memref<32x32xbf16, #tpu.memory_space<vmem>>, vector<32x16xbf16>
    %65 = arith.extf %64 : vector<32x16xbf16> to vector<32x16xf32>
    %cst_48 = arith.constant 6.875000e-01 : f32
    %66 = vector.broadcast %cst_48 : f32 to vector<32x16xf32>
    %67 = arith.mulf %66, %63 : vector<32x16xf32>
    %cst_49 = arith.constant 3.125000e-01 : f32
    %68 = vector.broadcast %cst_49 : f32 to vector<32x16xf32>
    %69 = arith.mulf %68, %65 : vector<32x16xf32>
    %70 = arith.addf %67, %69 : vector<32x16xf32>
    %71 = arith.truncf %70 : vector<32x16xf32> to vector<32x16xbf16>
    %c0_50 = arith.constant 0 : index
    %c0_51 = arith.constant 0 : index
    %c96 = arith.constant 96 : index
    %72 = vector.load %arg6[%c0_50, %c0_51, %c96] : memref<1x32x256xbf16, #tpu.memory_space<vmem>>, vector<1x32x16xbf16>
    %73 = vector.shape_cast %72 : vector<1x32x16xbf16> to vector<32x16xbf16>
    %74 = vector.shape_cast %71 : vector<32x16xbf16> to vector<1x32x16xbf16>
    tpu.vector_store %arg6[%c0_50, %c0_51, %c96], %74 {strides = array<i32>} : memref<1x32x256xbf16, #tpu.memory_space<vmem>>, vector<1x32x16xbf16>,
    %c0_52 = arith.constant 0 : index
    %c0_53 = arith.constant 0 : index
    %75 = vector.load %arg7[%c0_52, %c0_53] : memref<32x32xbf16, #tpu.memory_space<vmem>>, vector<32x16xbf16>
    %76 = arith.extf %75 : vector<32x16xbf16> to vector<32x16xf32>
    %c0_54 = arith.constant 0 : index
    %c16_55 = arith.constant 16 : index
    %77 = vector.load %arg7[%c0_54, %c16_55] : memref<32x32xbf16, #tpu.memory_space<vmem>>, vector<32x16xbf16>
    %78 = arith.extf %77 : vector<32x16xbf16> to vector<32x16xf32>
    %cst_56 = arith.constant 5.625000e-01 : f32
    %79 = vector.broadcast %cst_56 : f32 to vector<32x16xf32>
    %80 = arith.mulf %79, %76 : vector<32x16xf32>
    %cst_57 = arith.constant 4.375000e-01 : f32
    %81 = vector.broadcast %cst_57 : f32 to vector<32x16xf32>
    %82 = arith.mulf %81, %78 : vector<32x16xf32>
    %83 = arith.addf %80, %82 : vector<32x16xf32>
    %84 = arith.truncf %83 : vector<32x16xf32> to vector<32x16xbf16>
    %c0_58 = arith.constant 0 : index
    %c0_59 = arith.constant 0 : index
    %c112 = arith.constant 112 : index
    %85 = vector.load %arg6[%c0_58, %c0_59, %c112] : memref<1x32x256xbf16, #tpu.memory_space<vmem>>, vector<1x32x16xbf16>
    %86 = vector.shape_cast %85 : vector<1x32x16xbf16> to vector<32x16xbf16>
    %87 = vector.shape_cast %84 : vector<32x16xbf16> to vector<1x32x16xbf16>
    tpu.vector_store %arg6[%c0_58, %c0_59, %c112], %87 {strides = array<i32>} : memref<1x32x256xbf16, #tpu.memory_space<vmem>>, vector<1x32x16xbf16>,
    %c0_60 = arith.constant 0 : index
    %c0_61 = arith.constant 0 : index
    %88 = vector.load %arg7[%c0_60, %c0_61] : memref<32x32xbf16, #tpu.memory_space<vmem>>, vector<32x16xbf16>
    %89 = arith.extf %88 : vector<32x16xbf16> to vector<32x16xf32>
    %c0_62 = arith.constant 0 : index
    %c16_63 = arith.constant 16 : index
    %90 = vector.load %arg7[%c0_62, %c16_63] : memref<32x32xbf16, #tpu.memory_space<vmem>>, vector<32x16xbf16>
    %91 = arith.extf %90 : vector<32x16xbf16> to vector<32x16xf32>
    %cst_64 = arith.constant 4.375000e-01 : f32
    %92 = vector.broadcast %cst_64 : f32 to vector<32x16xf32>
    %93 = arith.mulf %92, %89 : vector<32x16xf32>
    %cst_65 = arith.constant 5.625000e-01 : f32
    %94 = vector.broadcast %cst_65 : f32 to vector<32x16xf32>
    %95 = arith.mulf %94, %91 : vector<32x16xf32>
    %96 = arith.addf %93, %95 : vector<32x16xf32>
    %97 = arith.truncf %96 : vector<32x16xf32> to vector<32x16xbf16>
    %c0_66 = arith.constant 0 : index
    %c0_67 = arith.constant 0 : index
    %c128 = arith.constant 128 : index
    %98 = vector.load %arg6[%c0_66, %c0_67, %c128] : memref<1x32x256xbf16, #tpu.memory_space<vmem>>, vector<1x32x16xbf16>
    %99 = vector.shape_cast %98 : vector<1x32x16xbf16> to vector<32x16xbf16>
    %100 = vector.shape_cast %97 : vector<32x16xbf16> to vector<1x32x16xbf16>
    tpu.vector_store %arg6[%c0_66, %c0_67, %c128], %100 {strides = array<i32>} : memref<1x32x256xbf16, #tpu.memory_space<vmem>>, vector<1x32x16xbf16>,
    %c0_68 = arith.constant 0 : index
    %c0_69 = arith.constant 0 : index
    %101 = vector.load %arg7[%c0_68, %c0_69] : memref<32x32xbf16, #tpu.memory_space<vmem>>, vector<32x16xbf16>
    %102 = arith.extf %101 : vector<32x16xbf16> to vector<32x16xf32>
    %c0_70 = arith.constant 0 : index
    %c16_71 = arith.constant 16 : index
    %103 = vector.load %arg7[%c0_70, %c16_71] : memref<32x32xbf16, #tpu.memory_space<vmem>>, vector<32x16xbf16>
    %104 = arith.extf %103 : vector<32x16xbf16> to vector<32x16xf32>
    %cst_72 = arith.constant 3.125000e-01 : f32
    %105 = vector.broadcast %cst_72 : f32 to vector<32x16xf32>
    %106 = arith.mulf %105, %102 : vector<32x16xf32>
    %cst_73 = arith.constant 6.875000e-01 : f32
    %107 = vector.broadcast %cst_73 : f32 to vector<32x16xf32>
    %108 = arith.mulf %107, %104 : vector<32x16xf32>
    %109 = arith.addf %106, %108 : vector<32x16xf32>
    %110 = arith.truncf %109 : vector<32x16xf32> to vector<32x16xbf16>
    %c0_74 = arith.constant 0 : index
    %c0_75 = arith.constant 0 : index
    %c144 = arith.constant 144 : index
    %111 = vector.load %arg6[%c0_74, %c0_75, %c144] : memref<1x32x256xbf16, #tpu.memory_space<vmem>>, vector<1x32x16xbf16>
    %112 = vector.shape_cast %111 : vector<1x32x16xbf16> to vector<32x16xbf16>
    %113 = vector.shape_cast %110 : vector<32x16xbf16> to vector<1x32x16xbf16>
    tpu.vector_store %arg6[%c0_74, %c0_75, %c144], %113 {strides = array<i32>} : memref<1x32x256xbf16, #tpu.memory_space<vmem>>, vector<1x32x16xbf16>,
    %c0_76 = arith.constant 0 : index
    %c0_77 = arith.constant 0 : index
    %114 = vector.load %arg7[%c0_76, %c0_77] : memref<32x32xbf16, #tpu.memory_space<vmem>>, vector<32x16xbf16>
    %115 = arith.extf %114 : vector<32x16xbf16> to vector<32x16xf32>
    %c0_78 = arith.constant 0 : index
    %c16_79 = arith.constant 16 : index
    %116 = vector.load %arg7[%c0_78, %c16_79] : memref<32x32xbf16, #tpu.memory_space<vmem>>, vector<32x16xbf16>
    %117 = arith.extf %116 : vector<32x16xbf16> to vector<32x16xf32>
    %cst_80 = arith.constant 1.875000e-01 : f32
    %118 = vector.broadcast %cst_80 : f32 to vector<32x16xf32>
    %119 = arith.mulf %118, %115 : vector<32x16xf32>
    %cst_81 = arith.constant 8.125000e-01 : f32
    %120 = vector.broadcast %cst_81 : f32 to vector<32x16xf32>
    %121 = arith.mulf %120, %117 : vector<32x16xf32>
    %122 = arith.addf %119, %121 : vector<32x16xf32>
    %123 = arith.truncf %122 : vector<32x16xf32> to vector<32x16xbf16>
    %c0_82 = arith.constant 0 : index
    %c0_83 = arith.constant 0 : index
    %c160 = arith.constant 160 : index
    %124 = vector.load %arg6[%c0_82, %c0_83, %c160] : memref<1x32x256xbf16, #tpu.memory_space<vmem>>, vector<1x32x16xbf16>
    %125 = vector.shape_cast %124 : vector<1x32x16xbf16> to vector<32x16xbf16>
    %126 = vector.shape_cast %123 : vector<32x16xbf16> to vector<1x32x16xbf16>
    tpu.vector_store %arg6[%c0_82, %c0_83, %c160], %126 {strides = array<i32>} : memref<1x32x256xbf16, #tpu.memory_space<vmem>>, vector<1x32x16xbf16>,
    %c0_84 = arith.constant 0 : index
    %c0_85 = arith.constant 0 : index
    %127 = vector.load %arg7[%c0_84, %c0_85] : memref<32x32xbf16, #tpu.memory_space<vmem>>, vector<32x16xbf16>
    %128 = arith.extf %127 : vector<32x16xbf16> to vector<32x16xf32>
    %c0_86 = arith.constant 0 : index
    %c16_87 = arith.constant 16 : index
    %129 = vector.load %arg7[%c0_86, %c16_87] : memref<32x32xbf16, #tpu.memory_space<vmem>>, vector<32x16xbf16>
    %130 = arith.extf %129 : vector<32x16xbf16> to vector<32x16xf32>
    %cst_88 = arith.constant 6.250000e-02 : f32
    %131 = vector.broadcast %cst_88 : f32 to vector<32x16xf32>
    %132 = arith.mulf %131, %128 : vector<32x16xf32>
    %cst_89 = arith.constant 9.375000e-01 : f32
    %133 = vector.broadcast %cst_89 : f32 to vector<32x16xf32>
    %134 = arith.mulf %133, %130 : vector<32x16xf32>
    %135 = arith.addf %132, %134 : vector<32x16xf32>
    %136 = arith.truncf %135 : vector<32x16xf32> to vector<32x16xbf16>
    %c0_90 = arith.constant 0 : index
    %c0_91 = arith.constant 0 : index
    %c176 = arith.constant 176 : index
    %137 = vector.load %arg6[%c0_90, %c0_91, %c176] : memref<1x32x256xbf16, #tpu.memory_space<vmem>>, vector<1x32x16xbf16>
    %138 = vector.shape_cast %137 : vector<1x32x16xbf16> to vector<32x16xbf16>
    %139 = vector.shape_cast %136 : vector<32x16xbf16> to vector<1x32x16xbf16>
    tpu.vector_store %arg6[%c0_90, %c0_91, %c176], %139 {strides = array<i32>} : memref<1x32x256xbf16, #tpu.memory_space<vmem>>, vector<1x32x16xbf16>,
    %c0_92 = arith.constant 0 : index
    %c16_93 = arith.constant 16 : index
    %140 = vector.load %arg7[%c0_92, %c16_93] : memref<32x32xbf16, #tpu.memory_space<vmem>>, vector<32x16xbf16>
    %141 = arith.extf %140 : vector<32x16xbf16> to vector<32x16xf32>
    %142 = arith.truncf %141 : vector<32x16xf32> to vector<32x16xbf16>
    %c0_94 = arith.constant 0 : index
    %c0_95 = arith.constant 0 : index
    %c192 = arith.constant 192 : index
    %143 = vector.load %arg6[%c0_94, %c0_95, %c192] : memref<1x32x256xbf16, #tpu.memory_space<vmem>>, vector<1x32x16xbf16>
    %144 = vector.shape_cast %143 : vector<1x32x16xbf16> to vector<32x16xbf16>
    %145 = vector.shape_cast %142 : vector<32x16xbf16> to vector<1x32x16xbf16>
    tpu.vector_store %arg6[%c0_94, %c0_95, %c192], %145 {strides = array<i32>} : memref<1x32x256xbf16, #tpu.memory_space<vmem>>, vector<1x32x16xbf16>,
    %c0_96 = arith.constant 0 : index
    %c16_97 = arith.constant 16 : index
    %146 = vector.load %arg7[%c0_96, %c16_97] : memref<32x32xbf16, #tpu.memory_space<vmem>>, vector<32x16xbf16>
    %147 = arith.extf %146 : vector<32x16xbf16> to vector<32x16xf32>
    %148 = arith.truncf %147 : vector<32x16xf32> to vector<32x16xbf16>
    %c0_98 = arith.constant 0 : index
    %c0_99 = arith.constant 0 : index
    %c208 = arith.constant 208 : index
    %149 = vector.load %arg6[%c0_98, %c0_99, %c208] : memref<1x32x256xbf16, #tpu.memory_space<vmem>>, vector<1x32x16xbf16>
    %150 = vector.shape_cast %149 : vector<1x32x16xbf16> to vector<32x16xbf16>
    %151 = vector.shape_cast %148 : vector<32x16xbf16> to vector<1x32x16xbf16>
    tpu.vector_store %arg6[%c0_98, %c0_99, %c208], %151 {strides = array<i32>} : memref<1x32x256xbf16, #tpu.memory_space<vmem>>, vector<1x32x16xbf16>,
    %c0_100 = arith.constant 0 : index
    %c16_101 = arith.constant 16 : index
    %152 = vector.load %arg7[%c0_100, %c16_101] : memref<32x32xbf16, #tpu.memory_space<vmem>>, vector<32x16xbf16>
    %153 = arith.extf %152 : vector<32x16xbf16> to vector<32x16xf32>
    %154 = arith.truncf %153 : vector<32x16xf32> to vector<32x16xbf16>
    %c0_102 = arith.constant 0 : index
    %c0_103 = arith.constant 0 : index
    %c224 = arith.constant 224 : index
    %155 = vector.load %arg6[%c0_102, %c0_103, %c224] : memref<1x32x256xbf16, #tpu.memory_space<vmem>>, vector<1x32x16xbf16>
    %156 = vector.shape_cast %155 : vector<1x32x16xbf16> to vector<32x16xbf16>
    %157 = vector.shape_cast %154 : vector<32x16xbf16> to vector<1x32x16xbf16>
    tpu.vector_store %arg6[%c0_102, %c0_103, %c224], %157 {strides = array<i32>} : memref<1x32x256xbf16, #tpu.memory_space<vmem>>, vector<1x32x16xbf16>,
    %c0_104 = arith.constant 0 : index
    %c16_105 = arith.constant 16 : index
    %158 = vector.load %arg7[%c0_104, %c16_105] : memref<32x32xbf16, #tpu.memory_space<vmem>>, vector<32x16xbf16>
    %159 = arith.extf %158 : vector<32x16xbf16> to vector<32x16xf32>
    %160 = arith.truncf %159 : vector<32x16xf32> to vector<32x16xbf16>
    %c0_106 = arith.constant 0 : index
    %c0_107 = arith.constant 0 : index
    %c240 = arith.constant 240 : index
    %161 = vector.load %arg6[%c0_106, %c0_107, %c240] : memref<1x32x256xbf16, #tpu.memory_space<vmem>>, vector<1x32x16xbf16>
    %162 = vector.shape_cast %161 : vector<1x32x16xbf16> to vector<32x16xbf16>
    %163 = vector.shape_cast %160 : vector<32x16xbf16> to vector<1x32x16xbf16>
    tpu.vector_store %arg6[%c0_106, %c0_107, %c240], %163 {strides = array<i32>} : memref<1x32x256xbf16, #tpu.memory_space<vmem>>, vector<1x32x16xbf16>,
    return
  }
  func.func @transform_0(%arg0: i32, %arg1: i32) -> (i32, i32, i32) {
    %c0_i32 = arith.constant 0 : i32
    %c0_i32_0 = arith.constant 0 : i32
    %c0_i32_1 = arith.constant 0 : i32
    return %arg0, %c0_i32, %c0_i32_0 : i32, i32, i32
  }
  func.func @transform_1(%arg0: i32, %arg1: i32) -> (i32, i32) {
    %c0_i32 = arith.constant 0 : i32
    %c0_i32_0 = arith.constant 0 : i32
    return %arg1, %c0_i32 : i32, i32
  }
  func.func @transform_2(%arg0: i32, %arg1: i32) -> (i32, i32) {
    %c0_i32 = arith.constant 0 : i32
    %c0_i32_0 = arith.constant 0 : i32
    return %arg1, %c0_i32 : i32, i32
  }
  func.func @transform_3(%arg0: i32, %arg1: i32) -> (i32, i32) {
    %c0_i32 = arith.constant 0 : i32
    %c0_i32_0 = arith.constant 0 : i32
    %c0_i32_1 = arith.constant 0 : i32
    return %c0_i32, %c0_i32_0 : i32, i32
  }
  func.func @transform_4(%arg0: i32, %arg1: i32) -> (i32, i32, i32) {
    %c0_i32 = arith.constant 0 : i32
    %c0_i32_0 = arith.constant 0 : i32
    return %arg0, %arg1, %c0_i32 : i32, i32, i32
  }
}

</mosaic_0001>

<llo_original>
// kernel: tpu_custom_call.1
$region0: #{tpu_custom_call.1}
  #allocation0 [shape = 'u32[]', space=smem, size = 0x4, offset = 0x4, fixed_abs, tag = 'smem constant byte address 0x4 - core index']
  #allocation1 [shape = 'u32[72,128]{1,0:T(1,128)}', space=vmem, size = 0x9000, scoped, tag = 'internal scratch']
  #allocation2 [shape = 'bf16[32,32]{1,0:T(8,128)(2,1)}', space=vmem, size = 0x2000, scoped, tag = 'scratch operand']
  %s0 = inlined_call_operand.vmem [shape: bf16[2,64,4], index: 0, kind: input, shape index: {}]
  %s1 = inlined_call_operand.vmem [shape: bf16[32,64], index: 1, kind: input, shape index: {}]
  %s2 = inlined_call_operand.vmem [shape: f32[32,1], index: 2, kind: input, shape index: {}]
  %s3 = inlined_call_operand.vmem [shape: bf16[4,32], index: 3, kind: input, shape index: {}]
  %s4 = inlined_call_operand.hbm [shape: bf16[2,32,256], index: 4, kind: output, shape index: {}]
  %s5 = sld [smem:[#allocation0]]
  $region49: #{tpu_custom_call.1} parent=0
    _
  %s7 = ssub.s32 1, %s5
  %s8 = scalar_select 0, %s7, %s5
  $region1: #{tpu_custom_call.1} parent=0
    #allocation3 [shape = 'u8[32768]{0}', space=vmem, size = 0x8000, scoped, tag = 'output window, operand 0']
    #allocation4 [shape = 's32[2]{0}', space=sflag, size = 0x8, scoped, tag = 'scoped memory for tpu_custom_call.1']
    %9 = vsyncpa [#allocation4], 0
    %s10 = scalar_lea.sflag [#allocation4], 1
    %11 = vsyncpa %s10, 0
    loop: start=0, step=1, limit=4
    $region2: #{tpu_custom_call.1} parent=1 // loop_pre_header
      _
    $region3: #{tpu_custom_call.1} parent=1 // loop_header
      %s13 = sphi 0, %s17
      %p14 = scmp.ge.s32.totalorder %s13, 4
      %s20 = sphi 0, %s32
      %s21 = sphi 0, %s28
      %s22 = sphi 0, %s20
      %s23 = sphi 0, %s21
      %s24 = sphi 0, %s22
      %s25 = sphi 0, %s23
      %s35 = sphi 0, %s37
      %s38 = sphi 0, %s35
      %s39 = sphi 0, %s38
      %s55 = sphi 0, %s39
      %s61 = sphi 0, %s63
      %s64 = sphi 0, %s61
      %s65 = sphi 0, %s64
      %s81 = sphi 0, %s65
      %s87 = sphi 0, %s89
      %s90 = sphi 0, %s87
      %s91 = sphi 0, %s90
      %s107 = sphi 0, %s91
      %s111 = sphi 0, %s111
      %s113 = sphi 0, %s111
      %s114 = sphi 0, %s113
      %s128 = sphi 0, %s114
      %s136 = sphi 0, %s138
      %s139 = sphi 0, %s136
      %s140 = sphi 0, %s139
      %s156 = sphi 0, %s140
    $region4: #{tpu_custom_call.1} parent=1 // loop_header_branch
      %16 = sbr.rel (%p14) target = $region8
    $region5: #{tpu_custom_call.1} parent=1 // loop_body
      %s18 = ssub.s32 %s13, 1
      %s19 = ssub.s32 %s13, 2
      %s26 = sadd.s32 1, %s21
      %p27 = scmp.ge.s32.totalorder %s26, 1
      %s28 = scalar_select %p27, 0, %s26
      %s29 = sadd.s32 1, %s20
      %s30 = scalar_select %p27, %s29, %s20
      %p31 = scmp.ge.s32.totalorder %s30, 2
      %s32 = scalar_select %p31, 0, %s30
      %s33 = ssub.s32 %s20, %s32
      %p34 = scmp.eq.s32.totalorder %s33, 0
      %s36 = sadd.s32 %s35, 1
      %s37 = scalar_select %p34, %s35, %s36
      %p40 = pneg %p34
      %p41 = scmp.eq.s32.totalorder %s13, 1
      %p42 = por %p40, %p41
      %p43 = scmp.ne.s32.totalorder %s35, %s38
      %p44 = scmp.eq.s32.totalorder %s13, 0
      %p45 = por %p43, %p44
      %p46 = scmp.ne.s32.totalorder %s35, %s38
      %p47 = scmp.eq.s32.totalorder %s18, 1
      %p48 = por %p46, %p47
      %p49 = scmp.ne.s32.totalorder %s38, %s39
      %p50 = scmp.eq.s32.totalorder %s18, 0
      %p51 = por %p49, %p50
      %p52 = scmp.ne.s32.totalorder %s38, %s39
      %p53 = scmp.eq.s32.totalorder %s19, 1
      %p54 = por %p52, %p53
      %p56 = scmp.ne.s32.totalorder %s39, %s55
      %p57 = scmp.eq.s32.totalorder %s19, 0
      %p58 = por %p56, %p57
      %s59 = ssub.s32 %s21, %s28
      %p60 = scmp.eq.s32.totalorder %s59, 0
      %s62 = sadd.s32 %s61, 1
      %s63 = scalar_select %p60, %s61, %s62
      %p66 = pneg %p60
      %p67 = scmp.eq.s32.totalorder %s13, 1
      %p68 = por %p66, %p67
      %p69 = scmp.ne.s32.totalorder %s61, %s64
      %p70 = scmp.eq.s32.totalorder %s13, 0
      %p71 = por %p69, %p70
      %p72 = scmp.ne.s32.totalorder %s61, %s64
      %p73 = scmp.eq.s32.totalorder %s18, 1
      %p74 = por %p72, %p73
      %p75 = scmp.ne.s32.totalorder %s64, %s65
      %p76 = scmp.eq.s32.totalorder %s18, 0
      %p77 = por %p75, %p76
      %p78 = scmp.ne.s32.totalorder %s64, %s65
      %p79 = scmp.eq.s32.totalorder %s19, 1
      %p80 = por %p78, %p79
      %p82 = scmp.ne.s32.totalorder %s65, %s81
      %p83 = scmp.eq.s32.totalorder %s19, 0
      %p84 = por %p82, %p83
      %s85 = ssub.s32 %s21, %s28
      %p86 = scmp.eq.s32.totalorder %s85, 0
      %s88 = sadd.s32 %s87, 1
      %s89 = scalar_select %p86, %s87, %s88
      %p92 = pneg %p86
      %p93 = scmp.eq.s32.totalorder %s13, 1
      %p94 = por %p92, %p93
      %p95 = scmp.ne.s32.totalorder %s87, %s90
      %p96 = scmp.eq.s32.totalorder %s13, 0
      %p97 = por %p95, %p96
      %p98 = scmp.ne.s32.totalorder %s87, %s90
      %p99 = scmp.eq.s32.totalorder %s18, 1
      %p100 = por %p98, %p99
      %p101 = scmp.ne.s32.totalorder %s90, %s91
      %p102 = scmp.eq.s32.totalorder %s18, 0
      %p103 = por %p101, %p102
      %p104 = scmp.ne.s32.totalorder %s90, %s91
      %p105 = scmp.eq.s32.totalorder %s19, 1
      %p106 = por %p104, %p105
      %p108 = scmp.ne.s32.totalorder %s91, %s107
      %p109 = scmp.eq.s32.totalorder %s19, 0
      %p110 = por %p108, %p109
      %s112 = sadd.s32 %s111, 1
      %p115 = scmp.eq.s32.totalorder %s13, 1
      %p116 = scmp.ne.s32.totalorder %s111, %s113
      %p117 = scmp.eq.s32.totalorder %s13, 0
      %p118 = por %p116, %p117
      %p119 = scmp.ne.s32.totalorder %s111, %s113
      %p120 = scmp.eq.s32.totalorder %s18, 1
      %p121 = por %p119, %p120
      %p122 = scmp.ne.s32.totalorder %s113, %s114
      %p123 = scmp.eq.s32.totalorder %s18, 0
      %p124 = por %p122, %p123
      %p125 = scmp.ne.s32.totalorder %s113, %s114
      %p126 = scmp.eq.s32.totalorder %s19, 1
      %p127 = por %p125, %p126
      %p129 = scmp.ne.s32.totalorder %s114, %s128
      %p130 = scmp.eq.s32.totalorder %s19, 0
      %p131 = por %p129, %p130
      %s132 = ssub.s32 %s20, %s32
      %s133 = ssub.s32 %s21, %s28
      %s134 = sor.u32 %s132, %s133
      %p135 = scmp.eq.s32.totalorder %s134, 0
      %s137 = sadd.s32 %s136, 1
      %s138 = scalar_select %p135, %s136, %s137
      %p141 = pneg %p135
      %p142 = scmp.eq.s32.totalorder %s13, 1
      %p143 = por %p141, %p142
      %p144 = scmp.ne.s32.totalorder %s136, %s139
      %p145 = scmp.eq.s32.totalorder %s13, 0
      %p146 = por %p144, %p145
      %p147 = scmp.ne.s32.totalorder %s136, %s139
      %p148 = scmp.eq.s32.totalorder %s18, 1
      %p149 = por %p147, %p148
      %p150 = scmp.ne.s32.totalorder %s139, %s140
      %p151 = scmp.eq.s32.totalorder %s18, 0
      %p152 = por %p150, %p151
      %p153 = scmp.ne.s32.totalorder %s139, %s140
      %p154 = scmp.eq.s32.totalorder %s19, 1
      %p155 = por %p153, %p154
      %p157 = scmp.ne.s32.totalorder %s140, %s156
      %p158 = scmp.eq.s32.totalorder %s19, 0
      %p159 = por %p157, %p158
      %p160 = scmp.le.s32.totalorder 1, %s13
      %p161 = scmp.lt.s32.totalorder %s13, 3
      %p162 = pnand %p160, %p161
      %p163 = pneg %p162
      // Predicated region
      $region9: #{tpu_custom_call.1} parent=5 // pred_check
        _
      $region10: #{tpu_custom_call.1} parent=5 // pred_check_branch
        %165 = sbr.rel (%p162) target = $region12
      $region11: #{tpu_custom_call.1} parent=5 // pred_region
        %s166 = ssub.s32 %s13, 1
        // Predicated region
        $region13: #{tpu_custom_call.1} parent=11 // pred_check
          %p167 = pneg %p77
        $region14: #{tpu_custom_call.1} parent=11 // pred_check_branch
          %169 = sbr.rel (%p167) target = $region16
        $region15: #{tpu_custom_call.1} parent=11 // pred_region
          %s170 = smul.u32 4, %s23
          %p171 = scmp.lt.s32.totalorder %s170, 3
          %s172 = scalar_select %p171, %s170, 3
          %s173 = smul.addr %s172, 4
          %s174 = scalar_lea.vmem %s1, %s173
          %s175 = smul.u32 4, %s23
        $region16: #{tpu_custom_call.1} parent=11 // pred_fallthru
          _
        // Predicated region
        $region17: #{tpu_custom_call.1} parent=11 // pred_check
          %p176 = pneg %p103
        $region18: #{tpu_custom_call.1} parent=11 // pred_check_branch
          %178 = sbr.rel (%p176) target = $region20
        $region19: #{tpu_custom_call.1} parent=11 // pred_region
          %s179 = smul.u32 4, %s23
          %p180 = scmp.lt.s32.totalorder %s179, 3
          %s181 = scalar_select %p180, %s179, 3
          %s182 = smul.addr %s181, 8
          %s183 = scalar_lea.vmem %s2, %s182
          %s184 = smul.u32 4, %s23
        $region20: #{tpu_custom_call.1} parent=11 // pred_fallthru
          _
        // Predicated region
        $region21: #{tpu_custom_call.1} parent=11 // pred_check
          %p185 = pneg %p124
        $region22: #{tpu_custom_call.1} parent=11 // pred_check_branch
          %187 = sbr.rel (%p185) target = $region24
        $region23: #{tpu_custom_call.1} parent=11 // pred_region
          _
        $region24: #{tpu_custom_call.1} parent=11 // pred_fallthru
          _
      $region12: #{tpu_custom_call.1} parent=5 // pred_fallthru
        _
      %p188 = scmp.lt.s32.totalorder %s13, 2
      // Predicated region
      $region25: #{tpu_custom_call.1} parent=5 // pred_check
        %p189 = pneg %p188
      $region26: #{tpu_custom_call.1} parent=5 // pred_check_branch
        %191 = sbr.rel (%p189) target = $region28
      $region27: #{tpu_custom_call.1} parent=5 // pred_region
        // Predicated region
        $region29: #{tpu_custom_call.1} parent=27 // pred_check
          %p192 = pneg %p45
        $region30: #{tpu_custom_call.1} parent=27 // pred_check_branch
          %194 = sbr.rel (%p192) target = $region32
        $region31: #{tpu_custom_call.1} parent=27 // pred_region
          %p195 = scmp.lt.s32.totalorder %s20, 1
          %s196 = scalar_select %p195, %s20, 1
          %s197 = smul.addr %s196, 8
          %s198 = smul.addr %s197, 4
          %s199 = scalar_lea.vmem %s0, %s198
        $region32: #{tpu_custom_call.1} parent=27 // pred_fallthru
          _
      $region28: #{tpu_custom_call.1} parent=5 // pred_fallthru
        _
      %p200 = scmp.le.s32.totalorder 1, %s13
      %p201 = scmp.lt.s32.totalorder %s13, 3
      %p202 = pnand %p200, %p201
      %p203 = pneg %p202
      // Predicated region
      $region33: #{tpu_custom_call.1} parent=5 // pred_check
        _
      $region34: #{tpu_custom_call.1} parent=5 // pred_check_branch
        %205 = sbr.rel (%p202) target = $region36
      $region35: #{tpu_custom_call.1} parent=5 // pred_region
        %s206 = ssub.s32 %s13, 1
        %p207 = scmp.lt.s32.totalorder %s22, 1
        %s208 = scalar_select %p207, %s22, 1
        %s209 = smul.addr %s208, 8
        %s210 = smul.addr %s209, 4
        %s211 = scalar_lea.vmem %s0, %s210
        %p212 = pneg %p51
        %p213 = pneg %p48
        %s214 = smul.u32 4, %s23
        %p215 = scmp.lt.s32.totalorder %s214, 3
        %s216 = scalar_select %p215, %s214, 3
        %s217 = smul.addr %s216, 4
        %s218 = scalar_lea.vmem %s1, %s217
        %p219 = pneg %p77
        %p220 = pneg %p74
        %s221 = smul.u32 4, %s23
        %p222 = scmp.lt.s32.totalorder %s221, 3
        %s223 = scalar_select %p222, %s221, 3
        %s224 = smul.addr %s223, 8
        %s225 = scalar_lea.vmem %s2, %s224
        %p226 = pneg %p103
        %p227 = pneg %p100
        %p228 = pneg %p124
        %p229 = pneg %p121
        %p230 = pneg %p152
        %p231 = pneg %p149
        %s232 = sand.u32 %s139, 1
        %s233 = scalar_lea.sflag [#allocation4], %s232
        %s234 = sand.u32 %s139, 1
        %s235 = smul.addr %s234, 32
        %s236 = scalar_lea.vmem [#allocation3], %s235
        %p237 = scmp.lt.s32.totalorder %s22, 1
        %s238 = scalar_select %p237, %s22, 1
        %s239 = smul.addr %s238, 8
        %s240 = smul.addr %s239, 4
        %s241 = scalar_lea.vmem %s0, %s240
        %s242 = smul.u32 4, %s23
        %p243 = scmp.lt.s32.totalorder %s242, 3
        %s244 = scalar_select %p243, %s242, 3
        %s245 = smul.addr %s244, 4
        %s246 = scalar_lea.vmem %s1, %s245
        %s247 = smul.u32 4, %s23
        %s248 = smul.u32 4, %s23
        %p249 = scmp.lt.s32.totalorder %s248, 3
        %s250 = scalar_select %p249, %s248, 3
        %s251 = smul.addr %s250, 8
        %s252 = scalar_lea.vmem %s2, %s251
        %s253 = smul.u32 4, %s23
        %s254 = smul.u32 4, %s23
        %v256 = vld [vmem:[%s241] sm:$0xf]
        %v257 = vld [vmem:[%s241 + $0x4] sm:$0xf]
        %v258 = vld [vmem:[%s241 + $0x8] sm:$0xf]
        %v259 = vld [vmem:[%s241 + $0xc] sm:$0xf]
        %v260 = vld [vmem:[%s241 + $0x10] sm:$0xf]
        %v261 = vld [vmem:[%s241 + $0x14] sm:$0xf]
        %v262 = vld [vmem:[%s241 + $0x18] sm:$0xf]
        %v263 = vld [vmem:[%s241 + $0x1c] sm:$0xf]
        %v264 = vld [vmem:[%s246] sm:$0xf]
        %v265 = vld [vmem:[%s246 + $0x4] sm:$0xf]
        %v266 = vld [vmem:[%s246 + $0x8] sm:$0xf]
        %v267 = vld [vmem:[%s246 + $0xc] sm:$0xf]
        %v268 = vld [vmem:[%s252] sm:$0xff]
        %v269 = vld [vmem:[%s252 + $0x8] sm:$0xff]
        %v270 = vld [vmem:[%s252 + $0x10] sm:$0xff]
        %v271 = vld [vmem:[%s252 + $0x18] sm:$0xff]
        %273 = vset.pattern.permute.xlu0 0
        %274 = vperm.xlu0 %273, %v268
        %v275 = vpop.permute.xlu0 %274
        %278 = vset.pattern.permute.xlu0 0
        %279 = vperm.xlu0 %278, %v269
        %v280 = vpop.permute.xlu0 %279
        %283 = vset.pattern.permute.xlu0 0
        %284 = vperm.xlu0 %283, %v270
        %v285 = vpop.permute.xlu0 %284
        %288 = vset.pattern.permute.xlu0 0
        %289 = vperm.xlu0 %288, %v271
        %v290 = vpop.permute.xlu0 %289
        %v296 = vunpack.c.l.b16 %v264
        %v297 = vunpack.c.l.b16 %v265
        %v298 = vunpack.c.l.b16 %v266
        %v299 = vunpack.c.l.b16 %v267
        %v300 = vpack.c.b16 %v297, %v296
        %v301 = vpack.c.b16 %v299, %v298
        %v310 = vunpack.c.l.b16 %v256
        %v311 = vunpack.c.l.b16 %v257
        %v312 = vunpack.c.l.b16 %v258
        %v313 = vunpack.c.l.b16 %v259
        %v314 = vunpack.c.l.b16 %v260
        %v315 = vunpack.c.l.b16 %v261
        %v316 = vunpack.c.l.b16 %v262
        %v317 = vunpack.c.l.b16 %v263
        %v318 = vpack.c.b16 %v311, %v310
        %v319 = vpack.c.b16 %v313, %v312
        %v320 = vpack.c.b16 %v315, %v314
        %v321 = vpack.c.b16 %v317, %v316
        %vm326 = vcmask 523264
        %v328 = vsel %vm326, %v300, 0
        %v331 = vsel %vm326, %v301, 0
        %333 = vmatpush.bf16.msra.mxu0 0
        %334 = vmatpush.bf16.msra.mxu0 0
        %335 = vmatpush.bf16.msra.mxu0 0
        %336 = vmatpush.bf16.msra.mxu0 0
        %337 = vmatpush.bf16.msra.mxu0 %v321
        %338 = vmatpush.bf16.msra.mxu0 %v320
        %339 = vmatpush.bf16.msra.mxu0 %v319
        %340 = vmatpush.bf16.msra.mxu0 %v318
        %341 = vmatmul.bf16.gmra.mxu0 %v328
        %v342 = vpop.f32.mrf.mxu0
        %v343 = vadd.f32 %v275, %v342
        %v344 = vpop.f32.mrf.mxu0
        %v345 = vadd.f32 %v280, %v344
        %346 = vmatmul.bf16.gmra.mxu0 %v331
        %v347 = vpop.f32.mrf.mxu0
        %v348 = vadd.f32 %v285, %v347
        %v349 = vpop.f32.mrf.mxu0
        %v350 = vadd.f32 %v290, %v349
        %351 = vdwg.mxu0
        %v352 = vpack.c.bf16 %v345, %v343
        %v353 = vpack.c.bf16 %v350, %v348
        %v354 = vld [vmem:[%s3] sm:$0x3]
        %vm355 = vcmask 31744
        %v357 = vsel %vm355, %v352, 0
        %v360 = vsel %vm355, %v353, 0
        %vm362 = vcmask 1041408
        %v364 = vsel %vm362, %v354, 0
        %366 = vmatpush.bf16.msra.mxu0 0
        %367 = vmatpush.bf16.msra.mxu0 0
        %368 = vmatpush.bf16.msra.mxu0 0
        %369 = vmatpush.bf16.msra.mxu0 0
        %370 = vmatpush.bf16.msra.mxu0 0
        %371 = vmatpush.bf16.msra.mxu0 0
        %372 = vmatpush.bf16.msra.mxu0 0
        %373 = vmatpush.bf16.msra.mxu0 %v364
        %374 = vmatmul.bf16.gmra.mxu0 %v357
        %v375 = vpop.f32.mrf.mxu0
        %v376 = vadd.f32 0.0, %v375
        %v377 = vpop.f32.mrf.mxu0
        %v378 = vadd.f32 0.0, %v377
        %379 = vmatmul.bf16.gmra.mxu0 %v360
        %v380 = vpop.f32.mrf.mxu0
        %v381 = vadd.f32 0.0, %v380
        %v382 = vpop.f32.mrf.mxu0
        %v383 = vadd.f32 0.0, %v382
        %384 = vdwg.mxu0
        %v385 = vpack.c.bf16 %v376, %v376
        %v386 = vpack.c.bf16 %v378, %v378
        %v387 = vpack.c.bf16 %v381, %v381
        %v388 = vpack.c.bf16 %v383, %v383
        %vm389 = vcmask 257024
        %390 = vst.msk [vmem:[#allocation2] sm:$0xf] %vm389, %v385
        %391 = vst.msk [vmem:[#allocation2 + $0x4] sm:$0xf] %vm389, %v386
        %392 = vst.msk [vmem:[#allocation2 + $0x8] sm:$0xf] %vm389, %v387
        %393 = vst.msk [vmem:[#allocation2 + $0xc] sm:$0xf] %vm389, %v388
        %v394 = vld [vmem:[#allocation2] sm:$0xf]
        %v395 = vld [vmem:[#allocation2 + $0x4] sm:$0xf]
        %v396 = vld [vmem:[#allocation2 + $0x8] sm:$0xf]
        %v397 = vld [vmem:[#allocation2 + $0xc] sm:$0xf]
        %vm398 = vcmask 125952
        %399 = vst.msk [vmem:[%s236] sm:$0xf] %vm398, %v394
        %400 = vst.msk [vmem:[%s236 + $0x8] sm:$0xf] %vm398, %v395
        %401 = vst.msk [vmem:[%s236 + $0x10] sm:$0xf] %vm398, %v396
        %402 = vst.msk [vmem:[%s236 + $0x18] sm:$0xf] %vm398, %v397
        %v403 = vld [vmem:[#allocation2] sm:$0xf]
        %v404 = vld [vmem:[#allocation2 + $0x4] sm:$0xf]
        %v405 = vld [vmem:[#allocation2 + $0x8] sm:$0xf]
        %v406 = vld [vmem:[#allocation2 + $0xc] sm:$0xf]
        %411 = vrot.lane.b32.xlu0 %v403, 16
        %v412 = vpop.permute.xlu0 %411
        %413 = vrot.lane.b32.xlu0 %v404, 16
        %v414 = vpop.permute.xlu0 %413
        %415 = vrot.lane.b32.xlu0 %v405, 16
        %v416 = vpop.permute.xlu0 %415
        %417 = vrot.lane.b32.xlu0 %v406, 16
        %v418 = vpop.permute.xlu0 %417
        %vm423 = vcmask 257152
        %424 = vst.msk [vmem:[%s236] sm:$0xf] %vm423, %v412
        %425 = vst.msk [vmem:[%s236 + $0x8] sm:$0xf] %vm423, %v414
        %426 = vst.msk [vmem:[%s236 + $0x10] sm:$0xf] %vm423, %v416
        %427 = vst.msk [vmem:[%s236 + $0x18] sm:$0xf] %vm423, %v418
        %v428 = vld [vmem:[#allocation2] sm:$0xf]
        %v429 = vld [vmem:[#allocation2 + $0x4] sm:$0xf]
        %v430 = vld [vmem:[#allocation2 + $0x8] sm:$0xf]
        %v431 = vld [vmem:[#allocation2 + $0xc] sm:$0xf]
        %436 = vrot.lane.b32.xlu0 %v428, 32
        %v437 = vpop.permute.xlu0 %436
        %438 = vrot.lane.b32.xlu0 %v429, 32
        %v439 = vpop.permute.xlu0 %438
        %440 = vrot.lane.b32.xlu0 %v430, 32
        %v441 = vpop.permute.xlu0 %440
        %442 = vrot.lane.b32.xlu0 %v431, 32
        %v443 = vpop.permute.xlu0 %442
        %vm448 = vcmask 388352
        %449 = vst.msk [vmem:[%s236] sm:$0xf] %vm448, %v437
        %450 = vst.msk [vmem:[%s236 + $0x8] sm:$0xf] %vm448, %v439
        %451 = vst.msk [vmem:[%s236 + $0x10] sm:$0xf] %vm448, %v441
        %452 = vst.msk [vmem:[%s236 + $0x18] sm:$0xf] %vm448, %v443
        %v453 = vld [vmem:[#allocation2] sm:$0xf]
        %v454 = vld [vmem:[#allocation2 + $0x4] sm:$0xf]
        %v455 = vld [vmem:[#allocation2 + $0x8] sm:$0xf]
        %v456 = vld [vmem:[#allocation2 + $0xc] sm:$0xf]
        %461 = vrot.lane.b32.xlu0 %v453, 48
        %v462 = vpop.permute.xlu0 %461
        %463 = vrot.lane.b32.xlu0 %v454, 48
        %v464 = vpop.permute.xlu0 %463
        %465 = vrot.lane.b32.xlu0 %v455, 48
        %v466 = vpop.permute.xlu0 %465
        %467 = vrot.lane.b32.xlu0 %v456, 48
        %v468 = vpop.permute.xlu0 %467
        %vm473 = vcmask 519552
        %474 = vst.msk [vmem:[%s236] sm:$0xf] %vm473, %v462
        %475 = vst.msk [vmem:[%s236 + $0x8] sm:$0xf] %vm473, %v464
        %476 = vst.msk [vmem:[%s236 + $0x10] sm:$0xf] %vm473, %v466
        %477 = vst.msk [vmem:[%s236 + $0x18] sm:$0xf] %vm473, %v468
        %v478 = vld [vmem:[#allocation2] sm:$0xf]
        %v479 = vld [vmem:[#allocation2 + $0x4] sm:$0xf]
        %v480 = vld [vmem:[#allocation2 + $0x8] sm:$0xf]
        %v481 = vld [vmem:[#allocation2 + $0xc] sm:$0xf]
        %v482 = vunpack.c.l.bf16 %v478
        %v483 = vunpack.c.l.bf16 %v479
        %v484 = vunpack.c.l.bf16 %v480
        %v485 = vunpack.c.l.bf16 %v481
        %v486 = vmul.f32 %v482, 0.9375
        %v487 = vmul.f32 %v483, 0.9375
        %v488 = vmul.f32 %v484, 0.9375
        %v489 = vmul.f32 %v485, 0.9375
        %v490 = vmul.f32 %v482, 0.0625
        %v491 = vmul.f32 %v483, 0.0625
        %v492 = vmul.f32 %v484, 0.0625
        %v493 = vmul.f32 %v485, 0.0625
        %498 = vrot.lane.b32.xlu0 %v490, 112
        %v499 = vpop.permute.xlu0 %498
        %500 = vrot.lane.b32.xlu0 %v491, 112
        %v501 = vpop.permute.xlu0 %500
        %502 = vrot.lane.b32.xlu0 %v492, 112
        %v503 = vpop.permute.xlu0 %502
        %504 = vrot.lane.b32.xlu0 %v493, 112
        %v505 = vpop.permute.xlu0 %504
        %v510 = vadd.f32 %v486, %v499
        %v511 = vadd.f32 %v487, %v501
        %v512 = vadd.f32 %v488, %v503
        %v513 = vadd.f32 %v489, %v505
        %v514 = vpack.c.bf16 %v510, %v510
        %v515 = vpack.c.bf16 %v511, %v511
        %v516 = vpack.c.bf16 %v512, %v512
        %v517 = vpack.c.bf16 %v513, %v513
        %522 = vrot.lane.b32.xlu0 %v514, 64
        %v523 = vpop.permute.xlu0 %522
        %524 = vrot.lane.b32.xlu0 %v515, 64
        %v525 = vpop.permute.xlu0 %524
        %526 = vrot.lane.b32.xlu0 %v516, 64
        %v527 = vpop.permute.xlu0 %526
        %528 = vrot.lane.b32.xlu0 %v517, 64
        %v529 = vpop.permute.xlu0 %528
        %vm534 = vcmask 650752
        %535 = vst.msk [vmem:[%s236] sm:$0xf] %vm534, %v523
        %536 = vst.msk [vmem:[%s236 + $0x8] sm:$0xf] %vm534, %v525
        %537 = vst.msk [vmem:[%s236 + $0x10] sm:$0xf] %vm534, %v527
        %538 = vst.msk [vmem:[%s236 + $0x18] sm:$0xf] %vm534, %v529
        %v539 = vld [vmem:[#allocation2] sm:$0xf]
        %v540 = vld [vmem:[#allocation2 + $0x4] sm:$0xf]
        %v541 = vld [vmem:[#allocation2 + $0x8] sm:$0xf]
        %v542 = vld [vmem:[#allocation2 + $0xc] sm:$0xf]
        %v543 = vunpack.c.l.bf16 %v539
        %v544 = vunpack.c.l.bf16 %v540
        %v545 = vunpack.c.l.bf16 %v541
        %v546 = vunpack.c.l.bf16 %v542
        %v547 = vmul.f32 %v543, 0.8125
        %v548 = vmul.f32 %v544, 0.8125
        %v549 = vmul.f32 %v545, 0.8125
        %v550 = vmul.f32 %v546, 0.8125
        %v551 = vmul.f32 %v543, 0.1875
        %v552 = vmul.f32 %v544, 0.1875
        %v553 = vmul.f32 %v545, 0.1875
        %v554 = vmul.f32 %v546, 0.1875
        %559 = vrot.lane.b32.xlu0 %v551, 112
        %v560 = vpop.permute.xlu0 %559
        %561 = vrot.lane.b32.xlu0 %v552, 112
        %v562 = vpop.permute.xlu0 %561
        %563 = vrot.lane.b32.xlu0 %v553, 112
        %v564 = vpop.permute.xlu0 %563
        %565 = vrot.lane.b32.xlu0 %v554, 112
        %v566 = vpop.permute.xlu0 %565
        %v571 = vadd.f32 %v547, %v560
        %v572 = vadd.f32 %v548, %v562
        %v573 = vadd.f32 %v549, %v564
        %v574 = vadd.f32 %v550, %v566
        %v575 = vpack.c.bf16 %v571, %v571
        %v576 = vpack.c.bf16 %v572, %v572
        %v577 = vpack.c.bf16 %v573, %v573
        %v578 = vpack.c.bf16 %v574, %v574
        %583 = vrot.lane.b32.xlu0 %v575, 80
        %v584 = vpop.permute.xlu0 %583
        %585 = vrot.lane.b32.xlu0 %v576, 80
        %v586 = vpop.permute.xlu0 %585
        %587 = vrot.lane.b32.xlu0 %v577, 80
        %v588 = vpop.permute.xlu0 %587
        %589 = vrot.lane.b32.xlu0 %v578, 80
        %v590 = vpop.permute.xlu0 %589
        %vm595 = vcmask 781952
        %596 = vst.msk [vmem:[%s236] sm:$0xf] %vm595, %v584
        %597 = vst.msk [vmem:[%s236 + $0x8] sm:$0xf] %vm595, %v586
        %598 = vst.msk [vmem:[%s236 + $0x10] sm:$0xf] %vm595, %v588
        %599 = vst.msk [vmem:[%s236 + $0x18] sm:$0xf] %vm595, %v590
        %v600 = vld [vmem:[#allocation2] sm:$0xf]
        %v601 = vld [vmem:[#allocation2 + $0x4] sm:$0xf]
        %v602 = vld [vmem:[#allocation2 + $0x8] sm:$0xf]
        %v603 = vld [vmem:[#allocation2 + $0xc] sm:$0xf]
        %v604 = vunpack.c.l.bf16 %v600
        %v605 = vunpack.c.l.bf16 %v601
        %v606 = vunpack.c.l.bf16 %v602
        %v607 = vunpack.c.l.bf16 %v603
        %v608 = vmul.f32 %v604, 0.6875
        %v609 = vmul.f32 %v605, 0.6875
        %v610 = vmul.f32 %v606, 0.6875
        %v611 = vmul.f32 %v607, 0.6875
        %v612 = vmul.f32 %v604, 0.3125
        %v613 = vmul.f32 %v605, 0.3125
        %v614 = vmul.f32 %v606, 0.3125
        %v615 = vmul.f32 %v607, 0.3125
        %620 = vrot.lane.b32.xlu0 %v612, 112
        %v621 = vpop.permute.xlu0 %620
        %622 = vrot.lane.b32.xlu0 %v613, 112
        %v623 = vpop.permute.xlu0 %622
        %624 = vrot.lane.b32.xlu0 %v614, 112
        %v625 = vpop.permute.xlu0 %624
        %626 = vrot.lane.b32.xlu0 %v615, 112
        %v627 = vpop.permute.xlu0 %626
        %v632 = vadd.f32 %v608, %v621
        %v633 = vadd.f32 %v609, %v623
        %v634 = vadd.f32 %v610, %v625
        %v635 = vadd.f32 %v611, %v627
        %v636 = vpack.c.bf16 %v632, %v632
        %v637 = vpack.c.bf16 %v633, %v633
        %v638 = vpack.c.bf16 %v634, %v634
        %v639 = vpack.c.bf16 %v635, %v635
        %644 = vrot.lane.b32.xlu0 %v636, 96
        %v645 = vpop.permute.xlu0 %644
        %646 = vrot.lane.b32.xlu0 %v637, 96
        %v647 = vpop.permute.xlu0 %646
        %648 = vrot.lane.b32.xlu0 %v638, 96
        %v649 = vpop.permute.xlu0 %648
        %650 = vrot.lane.b32.xlu0 %v639, 96
        %v651 = vpop.permute.xlu0 %650
        %vm656 = vcmask 913152
        %657 = vst.msk [vmem:[%s236] sm:$0xf] %vm656, %v645
        %658 = vst.msk [vmem:[%s236 + $0x8] sm:$0xf] %vm656, %v647
        %659 = vst.msk [vmem:[%s236 + $0x10] sm:$0xf] %vm656, %v649
        %660 = vst.msk [vmem:[%s236 + $0x18] sm:$0xf] %vm656, %v651
        %v661 = vld [vmem:[#allocation2] sm:$0xf]
        %v662 = vld [vmem:[#allocation2 + $0x4] sm:$0xf]
        %v663 = vld [vmem:[#allocation2 + $0x8] sm:$0xf]
        %v664 = vld [vmem:[#allocation2 + $0xc] sm:$0xf]
        %v665 = vunpack.c.l.bf16 %v661
        %v666 = vunpack.c.l.bf16 %v662
        %v667 = vunpack.c.l.bf16 %v663
        %v668 = vunpack.c.l.bf16 %v664
        %v669 = vmul.f32 %v665, 0.5625
        %v670 = vmul.f32 %v666, 0.5625
        %v671 = vmul.f32 %v667, 0.5625
        %v672 = vmul.f32 %v668, 0.5625
        %v673 = vmul.f32 %v665, 0.4375
        %v674 = vmul.f32 %v666, 0.4375
        %v675 = vmul.f32 %v667, 0.4375
        %v676 = vmul.f32 %v668, 0.4375
        %681 = vrot.lane.b32.xlu0 %v673, 112
        %v682 = vpop.permute.xlu0 %681
        %683 = vrot.lane.b32.xlu0 %v674, 112
        %v684 = vpop.permute.xlu0 %683
        %685 = vrot.lane.b32.xlu0 %v675, 112
        %v686 = vpop.permute.xlu0 %685
        %687 = vrot.lane.b32.xlu0 %v676, 112
        %v688 = vpop.permute.xlu0 %687
        %v693 = vadd.f32 %v669, %v682
        %v694 = vadd.f32 %v670, %v684
        %v695 = vadd.f32 %v671, %v686
        %v696 = vadd.f32 %v672, %v688
        %v697 = vpack.c.bf16 %v693, %v693
        %v698 = vpack.c.bf16 %v694, %v694
        %v699 = vpack.c.bf16 %v695, %v695
        %v700 = vpack.c.bf16 %v696, %v696
        %705 = vrot.lane.b32.xlu0 %v697, 112
        %v706 = vpop.permute.xlu0 %705
        %707 = vrot.lane.b32.xlu0 %v698, 112
        %v708 = vpop.permute.xlu0 %707
        %709 = vrot.lane.b32.xlu0 %v699, 112
        %v710 = vpop.permute.xlu0 %709
        %711 = vrot.lane.b32.xlu0 %v700, 112
        %v712 = vpop.permute.xlu0 %711
        %vm717 = vcmask 1044352
        %718 = vst.msk [vmem:[%s236] sm:$0xf] %vm717, %v706
        %719 = vst.msk [vmem:[%s236 + $0x8] sm:$0xf] %vm717, %v708
        %720 = vst.msk [vmem:[%s236 + $0x10] sm:$0xf] %vm717, %v710
        %721 = vst.msk [vmem:[%s236 + $0x18] sm:$0xf] %vm717, %v712
        %v722 = vld [vmem:[#allocation2] sm:$0xf]
        %v723 = vld [vmem:[#allocation2 + $0x4] sm:$0xf]
        %v724 = vld [vmem:[#allocation2 + $0x8] sm:$0xf]
        %v725 = vld [vmem:[#allocation2 + $0xc] sm:$0xf]
        %v726 = vunpack.c.l.bf16 %v722
        %v727 = vunpack.c.l.bf16 %v723
        %v728 = vunpack.c.l.bf16 %v724
        %v729 = vunpack.c.l.bf16 %v725
        %v730 = vmul.f32 %v726, 0.4375
        %v731 = vmul.f32 %v727, 0.4375
        %v732 = vmul.f32 %v728, 0.4375
        %v733 = vmul.f32 %v729, 0.4375
        %v734 = vmul.f32 %v726, 0.5625
        %v735 = vmul.f32 %v727, 0.5625
        %v736 = vmul.f32 %v728, 0.5625
        %v737 = vmul.f32 %v729, 0.5625
        %742 = vrot.lane.b32.xlu0 %v734, 112
        %v743 = vpop.permute.xlu0 %742
        %744 = vrot.lane.b32.xlu0 %v735, 112
        %v745 = vpop.permute.xlu0 %744
        %746 = vrot.lane.b32.xlu0 %v736, 112
        %v747 = vpop.permute.xlu0 %746
        %748 = vrot.lane.b32.xlu0 %v737, 112
        %v749 = vpop.permute.xlu0 %748
        %v754 = vadd.f32 %v730, %v743
        %v755 = vadd.f32 %v731, %v745
        %v756 = vadd.f32 %v732, %v747
        %v757 = vadd.f32 %v733, %v749
        %v758 = vpack.c.bf16 %v754, %v754
        %v759 = vpack.c.bf16 %v755, %v755
        %v760 = vpack.c.bf16 %v756, %v756
        %v761 = vpack.c.bf16 %v757, %v757
        %762 = vst.msk [vmem:[%s236 + $0x4] sm:$0xf] %vm398, %v758
        %763 = vst.msk [vmem:[%s236 + $0xc] sm:$0xf] %vm398, %v759
        %764 = vst.msk [vmem:[%s236 + $0x14] sm:$0xf] %vm398, %v760
        %765 = vst.msk [vmem:[%s236 + $0x1c] sm:$0xf] %vm398, %v761
        %v766 = vld [vmem:[#allocation2] sm:$0xf]
        %v767 = vld [vmem:[#allocation2 + $0x4] sm:$0xf]
        %v768 = vld [vmem:[#allocation2 + $0x8] sm:$0xf]
        %v769 = vld [vmem:[#allocation2 + $0xc] sm:$0xf]
        %v770 = vunpack.c.l.bf16 %v766
        %v771 = vunpack.c.l.bf16 %v767
        %v772 = vunpack.c.l.bf16 %v768
        %v773 = vunpack.c.l.bf16 %v769
        %v774 = vmul.f32 %v770, 0.3125
        %v775 = vmul.f32 %v771, 0.3125
        %v776 = vmul.f32 %v772, 0.3125
        %v777 = vmul.f32 %v773, 0.3125
        %v778 = vmul.f32 %v770, 0.6875
        %v779 = vmul.f32 %v771, 0.6875
        %v780 = vmul.f32 %v772, 0.6875
        %v781 = vmul.f32 %v773, 0.6875
        %786 = vrot.lane.b32.xlu0 %v778, 112
        %v787 = vpop.permute.xlu0 %786
        %788 = vrot.lane.b32.xlu0 %v779, 112
        %v789 = vpop.permute.xlu0 %788
        %790 = vrot.lane.b32.xlu0 %v780, 112
        %v791 = vpop.permute.xlu0 %790
        %792 = vrot.lane.b32.xlu0 %v781, 112
        %v793 = vpop.permute.xlu0 %792
        %v798 = vadd.f32 %v774, %v787
        %v799 = vadd.f32 %v775, %v789
        %v800 = vadd.f32 %v776, %v791
        %v801 = vadd.f32 %v777, %v793
        %v802 = vpack.c.bf16 %v798, %v798
        %v803 = vpack.c.bf16 %v799, %v799
        %v804 = vpack.c.bf16 %v800, %v800
        %v805 = vpack.c.bf16 %v801, %v801
        %810 = vrot.lane.b32.xlu0 %v802, 16
        %v811 = vpop.permute.xlu0 %810
        %812 = vrot.lane.b32.xlu0 %v803, 16
        %v813 = vpop.permute.xlu0 %812
        %814 = vrot.lane.b32.xlu0 %v804, 16
        %v815 = vpop.permute.xlu0 %814
        %816 = vrot.lane.b32.xlu0 %v805, 16
        %v817 = vpop.permute.xlu0 %816
        %822 = vst.msk [vmem:[%s236 + $0x4] sm:$0xf] %vm423, %v811
        %823 = vst.msk [vmem:[%s236 + $0xc] sm:$0xf] %vm423, %v813
        %824 = vst.msk [vmem:[%s236 + $0x14] sm:$0xf] %vm423, %v815
        %825 = vst.msk [vmem:[%s236 + $0x1c] sm:$0xf] %vm423, %v817
        %v826 = vld [vmem:[#allocation2] sm:$0xf]
        %v827 = vld [vmem:[#allocation2 + $0x4] sm:$0xf]
        %v828 = vld [vmem:[#allocation2 + $0x8] sm:$0xf]
        %v829 = vld [vmem:[#allocation2 + $0xc] sm:$0xf]
        %v830 = vunpack.c.l.bf16 %v826
        %v831 = vunpack.c.l.bf16 %v827
        %v832 = vunpack.c.l.bf16 %v828
        %v833 = vunpack.c.l.bf16 %v829
        %v834 = vmul.f32 %v830, 0.1875
        %v835 = vmul.f32 %v831, 0.1875
        %v836 = vmul.f32 %v832, 0.1875
        %v837 = vmul.f32 %v833, 0.1875
        %v838 = vmul.f32 %v830, 0.8125
        %v839 = vmul.f32 %v831, 0.8125
        %v840 = vmul.f32 %v832, 0.8125
        %v841 = vmul.f32 %v833, 0.8125
        %846 = vrot.lane.b32.xlu0 %v838, 112
        %v847 = vpop.permute.xlu0 %846
        %848 = vrot.lane.b32.xlu0 %v839, 112
        %v849 = vpop.permute.xlu0 %848
        %850 = vrot.lane.b32.xlu0 %v840, 112
        %v851 = vpop.permute.xlu0 %850
        %852 = vrot.lane.b32.xlu0 %v841, 112
        %v853 = vpop.permute.xlu0 %852
        %v858 = vadd.f32 %v834, %v847
        %v859 = vadd.f32 %v835, %v849
        %v860 = vadd.f32 %v836, %v851
        %v861 = vadd.f32 %v837, %v853
        %v862 = vpack.c.bf16 %v858, %v858
        %v863 = vpack.c.bf16 %v859, %v859
        %v864 = vpack.c.bf16 %v860, %v860
        %v865 = vpack.c.bf16 %v861, %v861
        %870 = vrot.lane.b32.xlu0 %v862, 32
        %v871 = vpop.permute.xlu0 %870
        %872 = vrot.lane.b32.xlu0 %v863, 32
        %v873 = vpop.permute.xlu0 %872
        %874 = vrot.lane.b32.xlu0 %v864, 32
        %v875 = vpop.permute.xlu0 %874
        %876 = vrot.lane.b32.xlu0 %v865, 32
        %v877 = vpop.permute.xlu0 %876
        %882 = vst.msk [vmem:[%s236 + $0x4] sm:$0xf] %vm448, %v871
        %883 = vst.msk [vmem:[%s236 + $0xc] sm:$0xf] %vm448, %v873
        %884 = vst.msk [vmem:[%s236 + $0x14] sm:$0xf] %vm448, %v875
        %885 = vst.msk [vmem:[%s236 + $0x1c] sm:$0xf] %vm448, %v877
        %v886 = vld [vmem:[#allocation2] sm:$0xf]
        %v887 = vld [vmem:[#allocation2 + $0x4] sm:$0xf]
        %v888 = vld [vmem:[#allocation2 + $0x8] sm:$0xf]
        %v889 = vld [vmem:[#allocation2 + $0xc] sm:$0xf]
        %v890 = vunpack.c.l.bf16 %v886
        %v891 = vunpack.c.l.bf16 %v887
        %v892 = vunpack.c.l.bf16 %v888
        %v893 = vunpack.c.l.bf16 %v889
        %v894 = vmul.f32 %v890, 0.0625
        %v895 = vmul.f32 %v891, 0.0625
        %v896 = vmul.f32 %v892, 0.0625
        %v897 = vmul.f32 %v893, 0.0625
        %v898 = vmul.f32 %v890, 0.9375
        %v899 = vmul.f32 %v891, 0.9375
        %v900 = vmul.f32 %v892, 0.9375
        %v901 = vmul.f32 %v893, 0.9375
        %906 = vrot.lane.b32.xlu0 %v898, 112
        %v907 = vpop.permute.xlu0 %906
        %908 = vrot.lane.b32.xlu0 %v899, 112
        %v909 = vpop.permute.xlu0 %908
        %910 = vrot.lane.b32.xlu0 %v900, 112
        %v911 = vpop.permute.xlu0 %910
        %912 = vrot.lane.b32.xlu0 %v901, 112
        %v913 = vpop.permute.xlu0 %912
        %v918 = vadd.f32 %v894, %v907
        %v919 = vadd.f32 %v895, %v909
        %v920 = vadd.f32 %v896, %v911
        %v921 = vadd.f32 %v897, %v913
        %v922 = vpack.c.bf16 %v918, %v918
        %v923 = vpack.c.bf16 %v919, %v919
        %v924 = vpack.c.bf16 %v920, %v920
        %v925 = vpack.c.bf16 %v921, %v921
        %930 = vrot.lane.b32.xlu0 %v922, 48
        %v931 = vpop.permute.xlu0 %930
        %932 = vrot.lane.b32.xlu0 %v923, 48
        %v933 = vpop.permute.xlu0 %932
        %934 = vrot.lane.b32.xlu0 %v924, 48
        %v935 = vpop.permute.xlu0 %934
        %936 = vrot.lane.b32.xlu0 %v925, 48
        %v937 = vpop.permute.xlu0 %936
        %942 = vst.msk [vmem:[%s236 + $0x4] sm:$0xf] %vm473, %v931
        %943 = vst.msk [vmem:[%s236 + $0xc] sm:$0xf] %vm473, %v933
        %944 = vst.msk [vmem:[%s236 + $0x14] sm:$0xf] %vm473, %v935
        %945 = vst.msk [vmem:[%s236 + $0x1c] sm:$0xf] %vm473, %v937
        %v946 = vld [vmem:[#allocation2] sm:$0xf]
        %v947 = vld [vmem:[#allocation2 + $0x4] sm:$0xf]
        %v948 = vld [vmem:[#allocation2 + $0x8] sm:$0xf]
        %v949 = vld [vmem:[#allocation2 + $0xc] sm:$0xf]
        %954 = vrot.lane.b32.xlu0 %v946, 48
        %v955 = vpop.permute.xlu0 %954
        %956 = vrot.lane.b32.xlu0 %v947, 48
        %v957 = vpop.permute.xlu0 %956
        %958 = vrot.lane.b32.xlu0 %v948, 48
        %v959 = vpop.permute.xlu0 %958
        %960 = vrot.lane.b32.xlu0 %v949, 48
        %v961 = vpop.permute.xlu0 %960
        %966 = vst.msk [vmem:[%s236 + $0x4] sm:$0xf] %vm534, %v955
        %967 = vst.msk [vmem:[%s236 + $0xc] sm:$0xf] %vm534, %v957
        %968 = vst.msk [vmem:[%s236 + $0x14] sm:$0xf] %vm534, %v959
        %969 = vst.msk [vmem:[%s236 + $0x1c] sm:$0xf] %vm534, %v961
        %v970 = vld [vmem:[#allocation2] sm:$0xf]
        %v971 = vld [vmem:[#allocation2 + $0x4] sm:$0xf]
        %v972 = vld [vmem:[#allocation2 + $0x8] sm:$0xf]
        %v973 = vld [vmem:[#allocation2 + $0xc] sm:$0xf]
        %978 = vrot.lane.b32.xlu0 %v970, 64
        %v979 = vpop.permute.xlu0 %978
        %980 = vrot.lane.b32.xlu0 %v971, 64
        %v981 = vpop.permute.xlu0 %980
        %982 = vrot.lane.b32.xlu0 %v972, 64
        %v983 = vpop.permute.xlu0 %982
        %984 = vrot.lane.b32.xlu0 %v973, 64
        %v985 = vpop.permute.xlu0 %984
        %990 = vst.msk [vmem:[%s236 + $0x4] sm:$0xf] %vm595, %v979
        %991 = vst.msk [vmem:[%s236 + $0xc] sm:$0xf] %vm595, %v981
        %992 = vst.msk [vmem:[%s236 + $0x14] sm:$0xf] %vm595, %v983
        %993 = vst.msk [vmem:[%s236 + $0x1c] sm:$0xf] %vm595, %v985
        %v994 = vld [vmem:[#allocation2] sm:$0xf]
        %v995 = vld [vmem:[#allocation2 + $0x4] sm:$0xf]
        %v996 = vld [vmem:[#allocation2 + $0x8] sm:$0xf]
        %v997 = vld [vmem:[#allocation2 + $0xc] sm:$0xf]
        %1002 = vrot.lane.b32.xlu0 %v994, 80
        %v1003 = vpop.permute.xlu0 %1002
        %1004 = vrot.lane.b32.xlu0 %v995, 80
        %v1005 = vpop.permute.xlu0 %1004
        %1006 = vrot.lane.b32.xlu0 %v996, 80
        %v1007 = vpop.permute.xlu0 %1006
        %1008 = vrot.lane.b32.xlu0 %v997, 80
        %v1009 = vpop.permute.xlu0 %1008
        %1014 = vst.msk [vmem:[%s236 + $0x4] sm:$0xf] %vm656, %v1003
        %1015 = vst.msk [vmem:[%s236 + $0xc] sm:$0xf] %vm656, %v1005
        %1016 = vst.msk [vmem:[%s236 + $0x14] sm:$0xf] %vm656, %v1007
        %1017 = vst.msk [vmem:[%s236 + $0x1c] sm:$0xf] %vm656, %v1009
        %v1018 = vld [vmem:[#allocation2] sm:$0xf]
        %v1019 = vld [vmem:[#allocation2 + $0x4] sm:$0xf]
        %v1020 = vld [vmem:[#allocation2 + $0x8] sm:$0xf]
        %v1021 = vld [vmem:[#allocation2 + $0xc] sm:$0xf]
        %1026 = vrot.lane.b32.xlu0 %v1018, 96
        %v1027 = vpop.permute.xlu0 %1026
        %1028 = vrot.lane.b32.xlu0 %v1019, 96
        %v1029 = vpop.permute.xlu0 %1028
        %1030 = vrot.lane.b32.xlu0 %v1020, 96
        %v1031 = vpop.permute.xlu0 %1030
        %1032 = vrot.lane.b32.xlu0 %v1021, 96
        %v1033 = vpop.permute.xlu0 %1032
        %1038 = vst.msk [vmem:[%s236 + $0x4] sm:$0xf] %vm717, %v1027
        %1039 = vst.msk [vmem:[%s236 + $0xc] sm:$0xf] %vm717, %v1029
        %1040 = vst.msk [vmem:[%s236 + $0x14] sm:$0xf] %vm717, %v1031
        %1041 = vst.msk [vmem:[%s236 + $0x1c] sm:$0xf] %vm717, %v1033
        %s1042 = sand.u32 %s139, 1
        %s1043 = scalar_lea.sflag [#allocation4], %s1042
        %s1044 = sand.u32 %s139, 1
        %s1045 = smul.addr %s1044, 32
        %s1046 = scalar_lea.vmem [#allocation3], %s1045
        // Predicated region
        $region37: #{tpu_custom_call.1} parent=35 // pred_check
          %p1047 = pneg %p149
        $region38: #{tpu_custom_call.1} parent=35 // pred_check_branch
          %1049 = sbr.rel (%p1047) target = $region40
        $region39: #{tpu_custom_call.1} parent=35 // pred_region
          %s1050 = smul.u32 4, %s23
          %1052 = vsyncadd %s1043, 0
          %s1053 = smul.addr %s1050, 2
          %s1054 = smul.addr %s22, 8
          %s1055 = sadd.s32 %s1053, %s1054
          %s1056 = smul.addr %s1055, 4
          %s1057 = scalar_lea.hbm %s4, %s1056
          %s1058 = sshll.u32 %s1046, 4
          %s1059 = int_to_ptr.vmem [resolvable:$true] %s1058
          %s1060 = sshll.u32 %s1057, 4
          %s1061 = int_to_ptr.hbm [resolvable:$true] %s1060
          %1066 = dma.vmem_to_hbm [thread:$0]  %s1059, 512, %s1061, %s1043, 128, 128, 8
        $region40: #{tpu_custom_call.1} parent=35 // pred_fallthru
          _
      $region36: #{tpu_custom_call.1} parent=5 // pred_fallthru
        _
      %p1067 = scmp.le.s32.totalorder 2, %s13
      // Predicated region
      $region41: #{tpu_custom_call.1} parent=5 // pred_check
        %p1068 = pneg %p1067
      $region42: #{tpu_custom_call.1} parent=5 // pred_check_branch
        %1070 = sbr.rel (%p1068) target = $region44
      $region43: #{tpu_custom_call.1} parent=5 // pred_region
        %s1071 = ssub.s32 %s13, 2
        // Predicated region
        $region45: #{tpu_custom_call.1} parent=43 // pred_check
          %p1072 = pneg %p155
        $region46: #{tpu_custom_call.1} parent=43 // pred_check_branch
          %1074 = sbr.rel (%p1072) target = $region48
        $region47: #{tpu_custom_call.1} parent=43 // pred_region
          %s1075 = sand.u32 %s140, 1
          %s1076 = scalar_lea.sflag [#allocation4], %s1075
          %s1077 = sand.u32 %s140, 1
          %s1078 = smul.addr %s1077, 32
          %s1079 = scalar_lea.vmem [#allocation3], %s1078
          %1081 = dma.done %s1076, 512
        $region48: #{tpu_custom_call.1} parent=43 // pred_fallthru
          _
      $region44: #{tpu_custom_call.1} parent=5 // pred_fallthru
        _
    $region6: #{tpu_custom_call.1} parent=1 // loop_footer
      %s17 = sadd.s32 1, %s13
    $region7: #{tpu_custom_call.1} parent=1 // loop_footer_branch
      %12 = sbr.rel target = $region3
    $region8: #{tpu_custom_call.1} parent=1 // loop_exit
      _
    %1082 = vsyncpa [#allocation4], 1
    %s1083 = scalar_lea.sflag [#allocation4], 1
    %1084 = vsyncpa %s1083, 1

</llo_original>
